<compile_context>
chip_gen: v7x
topology: tpu7x:2x2x1
jax: 0.10.0
libtpu: 0.0.40
codegen_flags: <defaults>
</compile_context>

<pallas_src>
import functools

import jax
import jax.numpy as jnp
from jax import lax
from jax.experimental import pallas as pl
from jax.experimental.pallas import tpu as pltpu

EPS = 1e-5
_VMEM_LIMIT = 48 * 1024 * 1024   # <= v7x 64 MiB physical, > v5e 16 MiB default


# ----------------------------- helpers -------------------------------------- #

def _cpad(c):
    """Round a channel count up to a multiple of 128 (lane width)."""
    return ((int(c) + 127) // 128) * 128


def _pick_tile(dim, target, quantum):
    """Largest tile <= target that divides dim and is a multiple of quantum;
    fall back to the full dim (always legal: block == full array dim)."""
    if dim <= target:
        return dim
    t = (target // quantum) * quantum
    while t >= quantum:
        if dim % t == 0:
            return t
        t -= quantum
    return dim


def _cparams(*sem):
    return pltpu.CompilerParams(dimension_semantics=sem,
                                vmem_limit_bytes=_VMEM_LIMIT)


def _sigmoid(x):
    # clamp the exponent argument so exp never overflows to +inf
    return pl.reciprocal(1.0 + jnp.exp(-jnp.clip(x, -60.0, 60.0)), approx=True)


def _swish(x):
    return x * _sigmoid(x)


def _act(x, act):
    if act == "swish":
        return _swish(x)
    if act == "sigmoid":
        return _sigmoid(x)
    return x


# ----------------------------- matmul kernels -------------------------------- #

def _mm_kernel(a_ref, w_ref, scale_ref, shift_ref, o_ref, acc_ref, *, act):
    """o = act((a @ w) * scale + shift); K axis accumulated in f32 VMEM scratch."""
    kk = pl.program_id(1)

    @pl.when(kk == 0)
    def _init():
        acc_ref[...] = jnp.zeros_like(acc_ref)

    acc_ref[...] += jnp.dot(a_ref[...], w_ref[...],
                            preferred_element_type=jnp.float32)

    @pl.when(kk == pl.num_programs(1) - 1)
    def _fin():
        out = acc_ref[...] * scale_ref[...] + shift_ref[...]
        o_ref[...] = _act(out, act).astype(o_ref.dtype)


def matmul_affine_act(a, w, scale, shift, act="none", out_dtype=jnp.bfloat16,
                      tm=1024, tk=512):
    M, K = a.shape
    Nc = w.shape[1]
    # full-Cout tile: the activation matrix is read exactly once.
    btn = Nc
    tm_cap = tm
    if M >= 16:
        tm_cap = min(tm, max(8, (M // 2 // 8) * 8))   # >=2 M steps for 2 TCs
    btm = _pick_tile(M, tm_cap, 8)
    btk = _pick_tile(K, tk, 128)
    grid = (M // btm, K // btk)
    return pl.pallas_call(
        functools.partial(_mm_kernel, act=act),
        out_shape=jax.ShapeDtypeStruct((M, Nc), out_dtype),
        grid=grid,
        in_specs=[
            pl.BlockSpec((btm, btk), lambda i, kk: (i, kk)),
            pl.BlockSpec((btk, btn), lambda i, kk: (kk, 0)),
            pl.BlockSpec((1, btn), lambda i, kk: (0, 0)),
            pl.BlockSpec((1, btn), lambda i, kk: (0, 0)),
        ],
        out_specs=pl.BlockSpec((btm, btn), lambda i, kk: (i, 0)),
        scratch_shapes=[pltpu.VMEM((btm, btn), jnp.float32)],
        compiler_params=_cparams("parallel", "arbitrary"),
    )(a, w, scale.reshape(1, Nc), shift.reshape(1, Nc))


def _proj_kernel(a_ref, g_ref, w_ref, scale_ref, shift_ref, *rest, has_skip):
    """Projection 1x1 conv with the SE gate applied to the LHS (bf16) and the
    residual skip-add fused into the epilogue."""
    if has_skip:
        skip_ref, o_ref, acc_ref = rest
    else:
        o_ref, acc_ref = rest
    kk = pl.program_id(2)

    @pl.when(kk == 0)
    def _init():
        acc_ref[...] = jnp.zeros_like(acc_ref)

    a = a_ref[0] * g_ref[0].astype(jnp.bfloat16)        # (tm,tk) * (1,tk) gate
    acc_ref[...] += jnp.dot(a, w_ref[...], preferred_element_type=jnp.float32)

    @pl.when(kk == pl.num_programs(2) - 1)
    def _fin():
        out = acc_ref[...] * scale_ref[...] + shift_ref[...]
        if has_skip:
            out = out + skip_ref[0].astype(jnp.float32)
        o_ref[0] = out.astype(o_ref.dtype)


def proj_matmul(dw, gate, w, scale, shift, skip=None):
    N, Ho, Wo, K = dw.shape
    HW = Ho * Wo
    Co = w.shape[1]
    a = dw.reshape(N, HW, K)
    g = gate.reshape(N, 1, K)
    tm = _pick_tile(HW, 512, 8)
    tk = _pick_tile(K, 512, 128)
    grid = (N, HW // tm, K // tk)
    in_specs = [
        pl.BlockSpec((1, tm, tk), lambda n, i, kk: (n, i, kk)),
        pl.BlockSpec((1, 1, tk), lambda n, i, kk: (n, 0, kk)),
        pl.BlockSpec((tk, Co), lambda n, i, kk: (kk, 0)),
        pl.BlockSpec((1, Co), lambda n, i, kk: (0, 0)),
        pl.BlockSpec((1, Co), lambda n, i, kk: (0, 0)),
    ]
    args = [a, g, w, scale.reshape(1, Co), shift.reshape(1, Co)]
    if skip is not None:
        in_specs.append(pl.BlockSpec((1, tm, Co), lambda n, i, kk: (n, i, 0)))
        args.append(skip.reshape(N, HW, Co))
    out = pl.pallas_call(
        functools.partial(_proj_kernel, has_skip=skip is not None),
        out_shape=jax.ShapeDtypeStruct((N, HW, Co), jnp.bfloat16),
        grid=grid,
        in_specs=in_specs,
        out_specs=pl.BlockSpec((1, tm, Co), lambda n, i, kk: (n, i, 0)),
        scratch_shapes=[pltpu.VMEM((tm, Co), jnp.float32)],
        compiler_params=_cparams("parallel", "parallel", "arbitrary"),
    )(*args)
    return out.reshape(N, Ho, Wo, Co)


# ----------------------------- depthwise conv -------------------------------- #

def _dw_accumulate(get_slab, w_ref, scale_ref, shift_ref, o_ref, pool_ref,
                   *, k, Ho, Wo, th, inv_hw):
    """Row-tiled tap loop: acc lives in vregs per (th, Wo, tc) tile, the fused
    global-average-pool is carried across row tiles and written once."""
    tc = o_ref.shape[-1]

    def body(i, pool):
        r0 = i * th
        acc = jnp.zeros((th, Wo, tc), jnp.float32)
        for ky in range(k):
            for kx in range(k):
                slab = get_slab(r0, ky, kx)
                acc = acc + slab.astype(jnp.float32) * w_ref[ky * k + kx, :]
        out = acc * scale_ref[0] + shift_ref[0]
        out = _swish(out)
        o_ref[0, pl.ds(r0, th)] = out.astype(o_ref.dtype)
        return pool + jnp.sum(out, axis=(0, 1))[None, :]

    pool = lax.fori_loop(0, Ho // th, body, jnp.zeros((1, tc), jnp.float32))
    pool_ref[...] = (pool * inv_hw).reshape(1, 1, tc)


def _dw_s1_kernel(x_ref, w_ref, scale_ref, shift_ref, o_ref, pool_ref, x_sc,
                  *, k, Ho, Wo, th, inv_hw):
    """Stride-1 depthwise conv; halo built in-kernel (zero-bordered VMEM scratch)."""
    pad = 1 if k == 3 else 2
    _, H, W, tc = x_ref.shape
    Hp, Wp, _ = x_sc.shape
    zrow = jnp.zeros((pad, Wp, tc), x_sc.dtype)
    zcol = jnp.zeros((Hp, pad, tc), x_sc.dtype)
    x_sc[0:pad, :, :] = zrow
    x_sc[Hp - pad:Hp, :, :] = zrow
    x_sc[:, 0:pad, :] = zcol
    x_sc[:, Wp - pad:Wp, :] = zcol
    x_sc[pad:pad + H, pad:pad + W, :] = x_ref[0]

    def get_slab(r0, ky, kx):
        # TODO(synk): the kx-shifted sublane slices could use pltpu.roll (XLU slot).
        return x_sc[pl.ds(r0 + ky, th), kx:kx + Wo, :]

    _dw_accumulate(get_slab, w_ref, scale_ref, shift_ref, o_ref, pool_ref,
                   k=k, Ho=Ho, Wo=Wo, th=th, inv_hw=inv_hw)


def _dw_phase_kernel(x_ref, w_ref, scale_ref, shift_ref, o_ref, pool_ref,
                     *, k, s, Ho, Wo, th, inv_hw):
    """Stride>1 depthwise conv on phase-split (space-to-depth) input."""

    def get_slab(r0, ky, kx):
        pi = (ky % s) * s + (kx % s)
        return x_ref[pi, pl.ds(r0 + ky // s, th), kx // s:kx // s + Wo, :]

    _dw_accumulate(get_slab, w_ref, scale_ref, shift_ref, o_ref, pool_ref,
                   k=k, Ho=Ho, Wo=Wo, th=th, inv_hw=inv_hw)


def depthwise_conv_bn_swish(x, w, scale, shift, k, stride):
    """Returns (dw_out (N,Ho,Wo,C) bf16, pooled mean (N,C) f32)."""
    N, H, W, C = x.shape
    pad = 1 if k == 3 else 2
    s = stride
    Ho = (H + 2 * pad - k) // s + 1
    Wo = (W + 2 * pad - k) // s + 1
    tc = 128 if C % 128 == 0 else C
    inv_hw = 1.0 / float(Ho * Wo)
    # row tile small enough that (th, Wo, 128) f32 stays register-resident
    th = _pick_tile(Ho, max(1, min(16, 384 // max(Wo, 1))), 1)

    wsc = [w, scale.reshape(1, C), shift.reshape(1, C)]
    wsc_specs = [pl.BlockSpec((k * k, tc), lambda n, c: (0, c)),
                 pl.BlockSpec((1, tc), lambda n, c: (0, c)),
                 pl.BlockSpec((1, tc), lambda n, c: (0, c))]
    common = dict(
        out_shape=(jax.ShapeDtypeStruct((N, Ho, Wo, C), jnp.bfloat16),
                   jax.ShapeDtypeStruct((N, 1, C), jnp.float32)),
        grid=(N, C // tc),
        out_specs=[pl.BlockSpec((1, Ho, Wo, tc), lambda n, c: (n, 0, 0, c)),
                   pl.BlockSpec((1, 1, tc), lambda n, c: (n, 0, c))],
        compiler_params=_cparams("parallel", "parallel"),
    )

    if s == 1:
        Hp, Wp = H + 2 * pad, W + 2 * pad
        dw, pooled = pl.pallas_call(
            functools.partial(_dw_s1_kernel, k=k, Ho=Ho, Wo=Wo, th=th,
                              inv_hw=inv_hw),
            in_specs=[pl.BlockSpec((1, H, W, tc),
                                   lambda n, c: (n, 0, 0, c))] + wsc_specs,
            scratch_shapes=[pltpu.VMEM((Hp, Wp, tc), jnp.bfloat16)],
            **common,
        )(x, *wsc)
    else:
        # stride>1: space-to-depth phase split done once in the wrapper (only the
        # strided outputs are computed in-kernel).
        Hp, Wp = H + 2 * pad, W + 2 * pad
        Hp_pad = -(-Hp // s) * s
        Wp_pad = -(-Wp // s) * s
        xp = jnp.pad(x, ((0, 0), (pad, pad + Hp_pad - Hp),
                         (pad, pad + Wp_pad - Wp), (0, 0)))
        Hq, Wq = Hp_pad // s, Wp_pad // s
        phases = [xp[:, a::s, b::s, :] for a in range(s) for b in range(s)]
        xph = jnp.stack(phases, axis=1).reshape(N * s * s, Hq, Wq, C)
        dw, pooled = pl.pallas_call(
            functools.partial(_dw_phase_kernel, k=k, s=s, Ho=Ho, Wo=Wo, th=th,
                              inv_hw=inv_hw),
            in_specs=[pl.BlockSpec((s * s, Hq, Wq, tc),
                                   lambda n, c: (n, 0, 0, c))] + wsc_specs,
            **common,
        )(xph, *wsc)
    return dw, pooled.reshape(N, C)


# ----------------------------- SE gate & pooling ------------------------------ #

def _se_kernel(p_ref, w1_ref, b1_ref, w2_ref, b2_ref, o_ref):
    """Both SE FCs fused: gate = sigmoid(W2 @ swish(W1 @ pooled + b1) + b2)."""
    p = p_ref[...].astype(jnp.bfloat16)
    h = jnp.dot(p, w1_ref[...], preferred_element_type=jnp.float32) + b1_ref[...]
    h = _swish(h)
    g = jnp.dot(h.astype(jnp.bfloat16), w2_ref[...],
                preferred_element_type=jnp.float32) + b2_ref[...]
    o_ref[...] = _sigmoid(g)


def se_gate(pooled, w1, b1, w2, b2):
    N, Cp = pooled.shape
    Sp = w1.shape[1]
    return pl.pallas_call(
        _se_kernel,
        out_shape=jax.ShapeDtypeStruct((N, Cp), jnp.float32),
        grid=(1,),
        in_specs=[
            pl.BlockSpec((N, Cp), lambda i: (0, 0)),
            pl.BlockSpec((Cp, Sp), lambda i: (0, 0)),
            pl.BlockSpec((1, Sp), lambda i: (0, 0)),
            pl.BlockSpec((Sp, Cp), lambda i: (0, 0)),
            pl.BlockSpec((1, Cp), lambda i: (0, 0)),
        ],
        out_specs=pl.BlockSpec((N, Cp), lambda i: (0, 0)),
        compiler_params=_cparams("arbitrary"),
    )(pooled, w1, b1.reshape(1, Sp), w2, b2.reshape(1, Cp))


def _gap_kernel(x_ref, o_ref, *, inv_hw):
    o_ref[...] = (jnp.sum(x_ref[0].astype(jnp.float32), axis=0)
                  * inv_hw)[None, None, :]


def global_avg_pool(x):
    """(N,H,W,C) -> (N,C) spatial mean, channel-tiled, batch/channel parallel."""
    N, H, W, C = x.shape
    xf = x.reshape(N, H * W, C)
    tc = 128 if C % 128 == 0 else C
    pooled = pl.pallas_call(
        functools.partial(_gap_kernel, inv_hw=1.0 / float(H * W)),
        out_shape=jax.ShapeDtypeStruct((N, 1, C), jnp.float32),
        grid=(N, C // tc),
        in_specs=[pl.BlockSpec((1, H * W, tc), lambda n, c: (n, 0, c))],
        out_specs=pl.BlockSpec((1, 1, tc), lambda n, c: (n, 0, c)),
        compiler_params=_cparams("parallel", "parallel"),
    )(xf)
    return pooled.reshape(N, C)


# ----------------------------- params --------------------------------------- #

def _pad2(w, rows, cols):
    return jnp.zeros((rows, cols), w.dtype).at[:w.shape[0], :w.shape[1]].set(w)


def _pad1(v, n):
    return jnp.zeros((n,), v.dtype).at[:v.shape[0]].set(v)


def init_params(cfg, num_classes, key):
    cnt = [0]

    def nk():
        cnt[0] += 1
        return jax.random.fold_in(key, cnt[0])

    def w_init(shape, fan_in):
        return jax.random.normal(nk(), shape, jnp.float32) / jnp.sqrt(float(fan_in))

    def bn_fold(c):
        # inference: running_mean=0, running_var=1
        gamma = 1.0 + 0.1 * jax.random.normal(nk(), (c,), jnp.float32)
        beta = 0.1 * jax.random.normal(nk(), (c,), jnp.float32)
        scale = gamma / jnp.sqrt(1.0 + EPS)
        shift = beta
        return scale, shift

    params = {"num_classes": num_classes}

    # stem: 3x3 conv 3->32, weight stored as im2col (27 rows padded to 32)
    k9 = 9 * 3
    kp = ((k9 + 7) // 8) * 8
    cout_p = _cpad(32)
    w = w_init((k9, 32), 27)
    params["stem_w"] = _pad2(w, kp, cout_p).astype(jnp.bfloat16)
    sc, sh = bn_fold(32)
    params["stem_scale"] = _pad1(sc, cout_p)
    params["stem_shift"] = _pad1(sh, cout_p)

    blocks = []
    in_planes = 32
    for expansion, out_planes, num_blocks, ksize, stride in zip(
            cfg["expansion"], cfg["out_planes"], cfg["num_blocks"],
            cfg["kernel_size"], cfg["stride"]):
        strides = [stride] + [1] * (num_blocks - 1)
        for s in strides:
            planes = expansion * in_planes
            cin_p, pl_p, co_p = _cpad(in_planes), _cpad(planes), _cpad(out_planes)
            b = {"expansion": expansion, "k": ksize, "stride": s,
                 "has_skip": (s == 1 and in_planes == out_planes)}
            if expansion != 1:
                w1 = w_init((in_planes, planes), in_planes)
                b["w1"] = _pad2(w1, cin_p, pl_p).astype(jnp.bfloat16)
                sc, sh = bn_fold(planes)
                b["bn1_scale"] = _pad1(sc, pl_p)
                b["bn1_shift"] = _pad1(sh, pl_p)
            w2 = w_init((ksize * ksize, planes), ksize * ksize)
            b["w2"] = _pad2(w2, ksize * ksize, pl_p)                    # f32 (VPU path)
            sc, sh = bn_fold(planes)
            b["bn2_scale"] = _pad1(sc, pl_p)
            b["bn2_shift"] = _pad1(sh, pl_p)
            se_planes = int(in_planes * 0.25)
            se_p = _cpad(se_planes)
            se1 = w_init((planes, se_planes), planes)
            b["se1_w"] = _pad2(se1, pl_p, se_p).astype(jnp.bfloat16)
            b["se1_b"] = _pad1(0.1 * jax.random.normal(nk(), (se_planes,), jnp.float32), se_p)
            se2 = w_init((se_planes, planes), se_planes)
            b["se2_w"] = _pad2(se2, se_p, pl_p).astype(jnp.bfloat16)
            b["se2_b"] = _pad1(0.1 * jax.random.normal(nk(), (planes,), jnp.float32), pl_p)
            w3 = w_init((planes, out_planes), planes)
            b["w3"] = _pad2(w3, pl_p, co_p).astype(jnp.bfloat16)
            sc, sh = bn_fold(out_planes)
            b["bn3_scale"] = _pad1(sc, co_p)
            b["bn3_shift"] = _pad1(sh, co_p)
            blocks.append(b)
            in_planes = out_planes
    params["blocks"] = blocks

    c_last_p = _cpad(in_planes)
    cls_p = _cpad(num_classes)
    lw = w_init((in_planes, num_classes), in_planes)
    params["lin_w"] = _pad2(lw, c_last_p, cls_p).astype(jnp.bfloat16)
    params["lin_b"] = _pad1(0.1 * jax.random.normal(nk(), (num_classes,), jnp.float32), cls_p)
    params["lin_scale"] = jnp.ones((cls_p,), jnp.float32)
    return params


# ----------------------------- forward -------------------------------------- #

def im2col_3x3(x, kp):
    """Stem im2col, emitted in bf16 (3-channel input only, so blow-up is tiny)."""
    N, H, W, C = x.shape
    xp = jnp.pad(x, ((0, 0), (1, 1), (1, 1), (0, 0)))
    cols = [xp[:, ky:ky + H, kx:kx + W, :] for ky in range(3) for kx in range(3)]
    a = jnp.concatenate(cols, axis=-1).reshape(N * H * W, 9 * C)
    a = jnp.pad(a, ((0, 0), (0, kp - 9 * C)))
    return a.astype(jnp.bfloat16)


def block_forward(p, x):
    N, H, W, cin_p = x.shape
    if p["expansion"] != 1:
        a = x.reshape(N * H * W, cin_p)
        out = matmul_affine_act(a, p["w1"], p["bn1_scale"], p["bn1_shift"],
                                act="swish").reshape(N, H, W, -1)
    else:
        out = x
    dw, pooled = depthwise_conv_bn_swish(out, p["w2"], p["bn2_scale"],
                                         p["bn2_shift"], p["k"], p["stride"])
    gate = se_gate(pooled, p["se1_w"], p["se1_b"], p["se2_w"], p["se2_b"])
    skip = x if p["has_skip"] else None
    # TODO(synk): drop_connect is a training-only stochastic op; eval path adds skip directly.
    return proj_matmul(dw, gate, p["w3"], p["bn3_scale"], p["bn3_shift"], skip=skip)


def efficientnet_forward(params, x_nchw):
    x = jnp.transpose(x_nchw, (0, 2, 3, 1)).astype(jnp.float32)   # NCHW -> NHWC
    N, H, W, _ = x.shape
    kp = params["stem_w"].shape[0]
    a = im2col_3x3(x, kp)
    out = matmul_affine_act(a, params["stem_w"], params["stem_scale"],
                            params["stem_shift"], act="swish").reshape(N, H, W, -1)
    for b in params["blocks"]:
        out = block_forward(b, out)
    pooled = global_avg_pool(out)                                  # (N, C_last_p) f32
    logits = matmul_affine_act(pooled.astype(jnp.bfloat16), params["lin_w"],
                               params["lin_scale"], params["lin_b"],
                               act="none", out_dtype=jnp.float32)
    return logits[:, :params["num_classes"]]


# ----------------------------- main ------------------------------------------ #

if __name__ == "__main__":
    # small EfficientNet-style cfg (same structure as the PyTorch module expects)
    cfg = {
        "num_blocks": [1, 2],
        "expansion": [1, 6],
        "out_planes": [16, 24],
        "kernel_size": [3, 3],
        "stride": [1, 2],
    }
    key = jax.random.PRNGKey(0)
    params = init_params(cfg, num_classes=10, key=key)
    x = jax.random.normal(jax.random.fold_in(key, 12345), (2, 3, 16, 16), jnp.float32)

    logits = efficientnet_forward(params, x)
    logits = jax.block_until_ready(logits)
    assert logits.shape == (2, 10)
    assert bool(jnp.all(jnp.isfinite(logits)))
    print("KERNEL_OK")
</pallas_src>

<mosaic_0001>
module attributes {stable_mosaic.version = 11 : i64} {
  func.func @_mm_kernel(%arg0: i32, %arg1: i32, %arg2: memref<256x32xbf16, #tpu.memory_space<vmem>>, %arg3: memref<32x128xbf16, #tpu.memory_space<vmem>>, %arg4: memref<1x128xf32, #tpu.memory_space<vmem>>, %arg5: memref<1x128xf32, #tpu.memory_space<vmem>>, %arg6: memref<256x128xbf16, #tpu.memory_space<vmem>>, %arg7: memref<256x128xf32, #tpu.memory_space<vmem>>) attributes {dimension_semantics = [#tpu.dimension_semantics<parallel>, #tpu.dimension_semantics<arbitrary>], iteration_bounds = array<i64: 2, 1>, scalar_prefetch = 0 : i64, scratch_operands = 1 : i64, tpu.core_type = #tpu.core_type<tc>, window_params = [{transform_indices = @transform_0, window_bounds = array<i64: 256, 32>}, {transform_indices = @transform_1, window_bounds = array<i64: 32, 128>}, {pipeline_mode = #tpu.pipeline_mode<synchronous>, transform_indices = @transform_2, window_bounds = array<i64: 1, 128>}, {pipeline_mode = #tpu.pipeline_mode<synchronous>, transform_indices = @transform_3, window_bounds = array<i64: 1, 128>}, {transform_indices = @transform_4, window_bounds = array<i64: 256, 128>}]} {
    %c0_i32 = arith.constant 0 : i32
    %0 = arith.cmpi eq, %arg1, %c0_i32 : i32
    %1 = arith.extui %0 : i1 to i32
    %c0_i32_0 = arith.constant 0 : i32
    %2 = arith.cmpi ne, %1, %c0_i32_0 : i32
    scf.if %2 {
      %cst_10 = arith.constant 0.000000e+00 : f32
      %12 = vector.broadcast %cst_10 : f32 to vector<256x128xf32>
      %c0_11 = arith.constant 0 : index
      %c0_12 = arith.constant 0 : index
      %13 = vector.load %arg7[%c0_11, %c0_12] : memref<256x128xf32, #tpu.memory_space<vmem>>, vector<256x128xf32>
      tpu.vector_store %arg7[%c0_11, %c0_12], %12 {strides = array<i32>} : memref<256x128xf32, #tpu.memory_space<vmem>>, vector<256x128xf32>,
    } else {
    }
    %c0 = arith.constant 0 : index
    %c0_1 = arith.constant 0 : index
    %3 = vector.load %arg7[%c0, %c0_1] : memref<256x128xf32, #tpu.memory_space<vmem>>, vector<256x128xf32>
    %c0_2 = arith.constant 0 : index
    %c0_3 = arith.constant 0 : index
    %4 = vector.load %arg2[%c0_2, %c0_3] : memref<256x32xbf16, #tpu.memory_space<vmem>>, vector<256x32xbf16>
    %c0_4 = arith.constant 0 : index
    %c0_5 = arith.constant 0 : index
    %5 = vector.load %arg3[%c0_4, %c0_5] : memref<32x128xbf16, #tpu.memory_space<vmem>>, vector<32x128xbf16>
    %cst = arith.constant dense<0.000000e+00> : vector<256x128xf32>
    %6 = tpu.matmul %4, %5, %cst {dimension_numbers = #tpu.dot_dimension_numbers<[1], [0], [0], [1], [0, 0, 1, 1], [], []>} : vector<256x32xbf16>, vector<32x128xbf16>, vector<256x128xf32> -> vector<256x128xf32>
    %7 = arith.addf %3, %6 : vector<256x128xf32>
    %c0_6 = arith.constant 0 : index
    %c0_7 = arith.constant 0 : index
    %8 = vector.load %arg7[%c0_6, %c0_7] : memref<256x128xf32, #tpu.memory_space<vmem>>, vector<256x128xf32>
    tpu.vector_store %arg7[%c0_6, %c0_7], %7 {strides = array<i32>} : memref<256x128xf32, #tpu.memory_space<vmem>>, vector<256x128xf32>,
    %c0_i32_8 = arith.constant 0 : i32
    %9 = arith.cmpi eq, %arg1, %c0_i32_8 : i32
    %10 = arith.extui %9 : i1 to i32
    %c0_i32_9 = arith.constant 0 : i32
    %11 = arith.cmpi ne, %10, %c0_i32_9 : i32
    scf.if %11 {
      %c0_10 = arith.constant 0 : index
      %c0_11 = arith.constant 0 : index
      %12 = vector.load %arg7[%c0_10, %c0_11] : memref<256x128xf32, #tpu.memory_space<vmem>>, vector<256x128xf32>
      %c0_12 = arith.constant 0 : index
      %c0_13 = arith.constant 0 : index
      %13 = vector.load %arg4[%c0_12, %c0_13] : memref<1x128xf32, #tpu.memory_space<vmem>>, vector<1x128xf32>
      %14 = vector.broadcast %13 : vector<1x128xf32> to vector<256x128xf32>
      %15 = arith.mulf %12, %14 : vector<256x128xf32>
      %c0_14 = arith.constant 0 : index
      %c0_15 = arith.constant 0 : index
      %16 = vector.load %arg5[%c0_14, %c0_15] : memref<1x128xf32, #tpu.memory_space<vmem>>, vector<1x128xf32>
      %17 = vector.broadcast %16 : vector<1x128xf32> to vector<256x128xf32>
      %18 = arith.addf %15, %17 : vector<256x128xf32>
      %cst_16 = arith.constant -6.000000e+01 : f32
      %cst_17 = arith.constant 6.000000e+01 : f32
      %19 = vector.broadcast %cst_16 : f32 to vector<256x128xf32>
      %20 = arith.maximumf %19, %18 : vector<256x128xf32>
      %21 = vector.broadcast %cst_17 : f32 to vector<256x128xf32>
      %22 = arith.minimumf %21, %20 : vector<256x128xf32>
      %cst_18 = arith.constant 0.000000e+00 : f32
      %23 = vector.broadcast %cst_18 : f32 to vector<256x128xf32>
      %24 = arith.subf %23, %22 : vector<256x128xf32>
      %25 = math.exp %24 : vector<256x128xf32>
      %cst_19 = arith.constant 1.000000e+00 : f32
      %26 = vector.broadcast %cst_19 : f32 to vector<256x128xf32>
      %27 = arith.addf %26, %25 : vector<256x128xf32>
      %28 = tpu.reciprocal %27 {approx = true} : vector<256x128xf32> -> vector<256x128xf32>
      %29 = arith.mulf %18, %28 : vector<256x128xf32>
      %30 = arith.truncf %29 : vector<256x128xf32> to vector<256x128xbf16>
      %c0_20 = arith.constant 0 : index
      %c0_21 = arith.constant 0 : index
      %31 = vector.load %arg6[%c0_20, %c0_21] : memref<256x128xbf16, #tpu.memory_space<vmem>>, vector<256x128xbf16>
      tpu.vector_store %arg6[%c0_20, %c0_21], %30 {strides = array<i32>} : memref<256x128xbf16, #tpu.memory_space<vmem>>, vector<256x128xbf16>,
    } else {
    }
    return
  }
  func.func @transform_0(%arg0: i32, %arg1: i32) -> (i32, i32) {
    %c0_i32 = arith.constant 0 : i32
    return %arg0, %arg1 : i32, i32
  }
  func.func @transform_1(%arg0: i32, %arg1: i32) -> (i32, i32) {
    %c0_i32 = arith.constant 0 : i32
    %c0_i32_0 = arith.constant 0 : i32
    return %arg1, %c0_i32 : i32, i32
  }
  func.func @transform_2(%arg0: i32, %arg1: i32) -> (i32, i32) {
    %c0_i32 = arith.constant 0 : i32
    %c0_i32_0 = arith.constant 0 : i32
    %c0_i32_1 = arith.constant 0 : i32
    return %c0_i32, %c0_i32_0 : i32, i32
  }
  func.func @transform_3(%arg0: i32, %arg1: i32) -> (i32, i32) {
    %c0_i32 = arith.constant 0 : i32
    %c0_i32_0 = arith.constant 0 : i32
    %c0_i32_1 = arith.constant 0 : i32
    return %c0_i32, %c0_i32_0 : i32, i32
  }
  func.func @transform_4(%arg0: i32, %arg1: i32) -> (i32, i32) {
    %c0_i32 = arith.constant 0 : i32
    %c0_i32_0 = arith.constant 0 : i32
    return %arg0, %c0_i32 : i32, i32
  }
}

</mosaic_0001>

<llo_original>
// kernel: tpu_custom_call.1
$region0: #{tpu_custom_call.1}
  #allocation0 [shape = 'u32[]', space=smem, size = 0x4, offset = 0x4, fixed_abs, tag = 'smem constant byte address 0x4 - core index']
  #allocation1 [shape = 'u32[144,128]{1,0:T(1,128)}', space=vmem, size = 0x12000, scoped, tag = 'internal scratch']
  #allocation2 [shape = 'f32[256,128]{1,0:T(8,128)}', space=vmem, size = 0x20000, scoped, tag = 'scratch operand']
  %s0 = inlined_call_operand.vmem [shape: bf16[512,32], index: 0, kind: input, shape index: {}]
  %s1 = inlined_call_operand.vmem [shape: bf16[32,128], index: 1, kind: input, shape index: {}]
  %s2 = inlined_call_operand.vmem [shape: f32[1,128], index: 2, kind: input, shape index: {}]
  %s3 = inlined_call_operand.vmem [shape: f32[1,128], index: 3, kind: input, shape index: {}]
  %s4 = inlined_call_operand.hbm [shape: bf16[512,128], index: 4, kind: output, shape index: {}]
  %s5 = sld [smem:[#allocation0]]
  $region57: #{tpu_custom_call.1} parent=0
    _
  %s7 = ssub.s32 1, %s5
  %s8 = scalar_select 0, %s7, %s5
  $region1: #{tpu_custom_call.1} parent=0
    #allocation3 [shape = 'u8[131072]{0}', space=vmem, size = 0x20000, scoped, tag = 'output window, operand 0']
    #allocation4 [shape = 's32[2]{0}', space=sflag, size = 0x8, scoped, tag = 'scoped memory for tpu_custom_call.1']
    %9 = vsyncpa [#allocation4], 0
    %s10 = scalar_lea.sflag [#allocation4], 1
    %11 = vsyncpa %s10, 0
    loop: start=0, step=1, limit=4
    $region2: #{tpu_custom_call.1} parent=1 // loop_pre_header
      _
    $region3: #{tpu_custom_call.1} parent=1 // loop_header
      %s13 = sphi 0, %s17
      %p14 = scmp.ge.s32.totalorder %s13, 4
      %s20 = sphi 0, %s32
      %s21 = sphi 0, %s28
      %s22 = sphi 0, %s20
      %s23 = sphi 0, %s21
      %s24 = sphi 0, %s22
      %s25 = sphi 0, %s23
      %s37 = sphi 0, %s39
      %s40 = sphi 0, %s37
      %s41 = sphi 0, %s40
      %s57 = sphi 0, %s41
      %s63 = sphi 0, %s65
      %s66 = sphi 0, %s63
      %s67 = sphi 0, %s66
      %s83 = sphi 0, %s67
      %s87 = sphi 0, %s87
      %s89 = sphi 0, %s87
      %s90 = sphi 0, %s89
      %s104 = sphi 0, %s90
      %s108 = sphi 0, %s108
      %s110 = sphi 0, %s108
      %s111 = sphi 0, %s110
      %s125 = sphi 0, %s111
      %s131 = sphi 0, %s133
      %s134 = sphi 0, %s131
      %s135 = sphi 0, %s134
      %s151 = sphi 0, %s135
    $region4: #{tpu_custom_call.1} parent=1 // loop_header_branch
      %16 = sbr.rel (%p14) target = $region8
    $region5: #{tpu_custom_call.1} parent=1 // loop_body
      %s18 = ssub.s32 %s13, 1
      %s19 = ssub.s32 %s13, 2
      %s26 = sadd.s32 1, %s21
      %p27 = scmp.ge.s32.totalorder %s26, 1
      %s28 = scalar_select %p27, 0, %s26
      %s29 = sadd.s32 1, %s20
      %s30 = scalar_select %p27, %s29, %s20
      %p31 = scmp.ge.s32.totalorder %s30, 2
      %s32 = scalar_select %p31, 0, %s30
      %s33 = ssub.s32 %s20, %s32
      %s34 = ssub.s32 %s21, %s28
      %s35 = sor.u32 %s33, %s34
      %p36 = scmp.eq.s32.totalorder %s35, 0
      %s38 = sadd.s32 %s37, 1
      %s39 = scalar_select %p36, %s37, %s38
      %p42 = pneg %p36
      %p43 = scmp.eq.s32.totalorder %s13, 1
      %p44 = por %p42, %p43
      %p45 = scmp.ne.s32.totalorder %s37, %s40
      %p46 = scmp.eq.s32.totalorder %s13, 0
      %p47 = por %p45, %p46
      %p48 = scmp.ne.s32.totalorder %s37, %s40
      %p49 = scmp.eq.s32.totalorder %s18, 1
      %p50 = por %p48, %p49
      %p51 = scmp.ne.s32.totalorder %s40, %s41
      %p52 = scmp.eq.s32.totalorder %s18, 0
      %p53 = por %p51, %p52
      %p54 = scmp.ne.s32.totalorder %s40, %s41
      %p55 = scmp.eq.s32.totalorder %s19, 1
      %p56 = por %p54, %p55
      %p58 = scmp.ne.s32.totalorder %s41, %s57
      %p59 = scmp.eq.s32.totalorder %s19, 0
      %p60 = por %p58, %p59
      %s61 = ssub.s32 %s21, %s28
      %p62 = scmp.eq.s32.totalorder %s61, 0
      %s64 = sadd.s32 %s63, 1
      %s65 = scalar_select %p62, %s63, %s64
      %p68 = pneg %p62
      %p69 = scmp.eq.s32.totalorder %s13, 1
      %p70 = por %p68, %p69
      %p71 = scmp.ne.s32.totalorder %s63, %s66
      %p72 = scmp.eq.s32.totalorder %s13, 0
      %p73 = por %p71, %p72
      %p74 = scmp.ne.s32.totalorder %s63, %s66
      %p75 = scmp.eq.s32.totalorder %s18, 1
      %p76 = por %p74, %p75
      %p77 = scmp.ne.s32.totalorder %s66, %s67
      %p78 = scmp.eq.s32.totalorder %s18, 0
      %p79 = por %p77, %p78
      %p80 = scmp.ne.s32.totalorder %s66, %s67
      %p81 = scmp.eq.s32.totalorder %s19, 1
      %p82 = por %p80, %p81
      %p84 = scmp.ne.s32.totalorder %s67, %s83
      %p85 = scmp.eq.s32.totalorder %s19, 0
      %p86 = por %p84, %p85
      %s88 = sadd.s32 %s87, 1
      %p91 = scmp.eq.s32.totalorder %s13, 1
      %p92 = scmp.ne.s32.totalorder %s87, %s89
      %p93 = scmp.eq.s32.totalorder %s13, 0
      %p94 = por %p92, %p93
      %p95 = scmp.ne.s32.totalorder %s87, %s89
      %p96 = scmp.eq.s32.totalorder %s18, 1
      %p97 = por %p95, %p96
      %p98 = scmp.ne.s32.totalorder %s89, %s90
      %p99 = scmp.eq.s32.totalorder %s18, 0
      %p100 = por %p98, %p99
      %p101 = scmp.ne.s32.totalorder %s89, %s90
      %p102 = scmp.eq.s32.totalorder %s19, 1
      %p103 = por %p101, %p102
      %p105 = scmp.ne.s32.totalorder %s90, %s104
      %p106 = scmp.eq.s32.totalorder %s19, 0
      %p107 = por %p105, %p106
      %s109 = sadd.s32 %s108, 1
      %p112 = scmp.eq.s32.totalorder %s13, 1
      %p113 = scmp.ne.s32.totalorder %s108, %s110
      %p114 = scmp.eq.s32.totalorder %s13, 0
      %p115 = por %p113, %p114
      %p116 = scmp.ne.s32.totalorder %s108, %s110
      %p117 = scmp.eq.s32.totalorder %s18, 1
      %p118 = por %p116, %p117
      %p119 = scmp.ne.s32.totalorder %s110, %s111
      %p120 = scmp.eq.s32.totalorder %s18, 0
      %p121 = por %p119, %p120
      %p122 = scmp.ne.s32.totalorder %s110, %s111
      %p123 = scmp.eq.s32.totalorder %s19, 1
      %p124 = por %p122, %p123
      %p126 = scmp.ne.s32.totalorder %s111, %s125
      %p127 = scmp.eq.s32.totalorder %s19, 0
      %p128 = por %p126, %p127
      %s129 = ssub.s32 %s20, %s32
      %p130 = scmp.eq.s32.totalorder %s129, 0
      %s132 = sadd.s32 %s131, 1
      %s133 = scalar_select %p130, %s131, %s132
      %p136 = pneg %p130
      %p137 = scmp.eq.s32.totalorder %s13, 1
      %p138 = por %p136, %p137
      %p139 = scmp.ne.s32.totalorder %s131, %s134
      %p140 = scmp.eq.s32.totalorder %s13, 0
      %p141 = por %p139, %p140
      %p142 = scmp.ne.s32.totalorder %s131, %s134
      %p143 = scmp.eq.s32.totalorder %s18, 1
      %p144 = por %p142, %p143
      %p145 = scmp.ne.s32.totalorder %s134, %s135
      %p146 = scmp.eq.s32.totalorder %s18, 0
      %p147 = por %p145, %p146
      %p148 = scmp.ne.s32.totalorder %s134, %s135
      %p149 = scmp.eq.s32.totalorder %s19, 1
      %p150 = por %p148, %p149
      %p152 = scmp.ne.s32.totalorder %s135, %s151
      %p153 = scmp.eq.s32.totalorder %s19, 0
      %p154 = por %p152, %p153
      %p155 = scmp.le.s32.totalorder 1, %s13
      %p156 = scmp.lt.s32.totalorder %s13, 3
      %p157 = pnand %p155, %p156
      %p158 = pneg %p157
      // Predicated region
      $region9: #{tpu_custom_call.1} parent=5 // pred_check
        _
      $region10: #{tpu_custom_call.1} parent=5 // pred_check_branch
        %160 = sbr.rel (%p157) target = $region12
      $region11: #{tpu_custom_call.1} parent=5 // pred_region
        %s161 = ssub.s32 %s13, 1
        // Predicated region
        $region13: #{tpu_custom_call.1} parent=11 // pred_check
          %p162 = pneg %p79
        $region14: #{tpu_custom_call.1} parent=11 // pred_check_branch
          %164 = sbr.rel (%p162) target = $region16
        $region15: #{tpu_custom_call.1} parent=11 // pred_region
          %s165 = smul.u32 4, %s23
          %p166 = scmp.lt.s32.totalorder %s165, 3
          %s167 = scalar_select %p166, %s165, 3
          %s168 = smul.addr %s167, 4
          %s169 = scalar_lea.vmem %s1, %s168
          %s170 = smul.u32 4, %s23
        $region16: #{tpu_custom_call.1} parent=11 // pred_fallthru
          _
        // Predicated region
        $region17: #{tpu_custom_call.1} parent=11 // pred_check
          %p171 = pneg %p100
        $region18: #{tpu_custom_call.1} parent=11 // pred_check_branch
          %173 = sbr.rel (%p171) target = $region20
        $region19: #{tpu_custom_call.1} parent=11 // pred_region
          _
        $region20: #{tpu_custom_call.1} parent=11 // pred_fallthru
          _
        // Predicated region
        $region21: #{tpu_custom_call.1} parent=11 // pred_check
          %p174 = pneg %p121
        $region22: #{tpu_custom_call.1} parent=11 // pred_check_branch
          %176 = sbr.rel (%p174) target = $region24
        $region23: #{tpu_custom_call.1} parent=11 // pred_region
          _
        $region24: #{tpu_custom_call.1} parent=11 // pred_fallthru
          _
      $region12: #{tpu_custom_call.1} parent=5 // pred_fallthru
        _
      %p177 = scmp.lt.s32.totalorder %s13, 2
      // Predicated region
      $region25: #{tpu_custom_call.1} parent=5 // pred_check
        %p178 = pneg %p177
      $region26: #{tpu_custom_call.1} parent=5 // pred_check_branch
        %180 = sbr.rel (%p178) target = $region28
      $region27: #{tpu_custom_call.1} parent=5 // pred_region
        // Predicated region
        $region29: #{tpu_custom_call.1} parent=27 // pred_check
          %p181 = pneg %p47
        $region30: #{tpu_custom_call.1} parent=27 // pred_check_branch
          %183 = sbr.rel (%p181) target = $region32
        $region31: #{tpu_custom_call.1} parent=27 // pred_region
          %s184 = smul.u32 32, %s20
          %p185 = scmp.lt.s32.totalorder %s184, 63
          %s186 = scalar_select %p185, %s184, 63
          %p187 = scmp.lt.s32.totalorder %s21, 0
          %s188 = scalar_select %p187, %s21, 0
          %s189 = sadd.s32 %s188, %s186
          %s190 = smul.addr %s189, 4
          %s191 = scalar_lea.vmem %s0, %s190
          %s192 = smul.u32 32, %s20
        $region32: #{tpu_custom_call.1} parent=27 // pred_fallthru
          _
      $region28: #{tpu_custom_call.1} parent=5 // pred_fallthru
        _
      %p193 = scmp.le.s32.totalorder 1, %s13
      %p194 = scmp.lt.s32.totalorder %s13, 3
      %p195 = pnand %p193, %p194
      %p196 = pneg %p195
      // Predicated region
      $region33: #{tpu_custom_call.1} parent=5 // pred_check
        _
      $region34: #{tpu_custom_call.1} parent=5 // pred_check_branch
        %198 = sbr.rel (%p195) target = $region36
      $region35: #{tpu_custom_call.1} parent=5 // pred_region
        %s199 = ssub.s32 %s13, 1
        %s200 = smul.u32 32, %s22
        %p201 = scmp.lt.s32.totalorder %s200, 63
        %s202 = scalar_select %p201, %s200, 63
        %p203 = scmp.lt.s32.totalorder %s23, 0
        %s204 = scalar_select %p203, %s23, 0
        %s205 = sadd.s32 %s204, %s202
        %s206 = smul.addr %s205, 4
        %s207 = scalar_lea.vmem %s0, %s206
        %p208 = pneg %p53
        %p209 = pneg %p50
        %s210 = smul.u32 4, %s23
        %p211 = scmp.lt.s32.totalorder %s210, 3
        %s212 = scalar_select %p211, %s210, 3
        %s213 = smul.addr %s212, 4
        %s214 = scalar_lea.vmem %s1, %s213
        %p215 = pneg %p79
        %p216 = pneg %p76
        %p217 = pneg %p100
        %p218 = pneg %p97
        %p219 = pneg %p121
        %p220 = pneg %p118
        %p221 = pneg %p147
        %p222 = pneg %p144
        %s223 = sand.u32 %s134, 1
        %s224 = scalar_lea.sflag [#allocation4], %s223
        %s225 = sand.u32 %s134, 1
        %s226 = smul.addr %s225, 128
        %s227 = scalar_lea.vmem [#allocation3], %s226
        %s228 = smul.u32 32, %s22
        %p229 = scmp.lt.s32.totalorder %s228, 63
        %s230 = scalar_select %p229, %s228, 63
        %p231 = scmp.lt.s32.totalorder %s23, 0
        %s232 = scalar_select %p231, %s23, 0
        %s233 = sadd.s32 %s232, %s230
        %s234 = smul.addr %s233, 4
        %s235 = scalar_lea.vmem %s0, %s234
        %s236 = smul.u32 32, %s22
        %s237 = smul.u32 4, %s23
        %p238 = scmp.lt.s32.totalorder %s237, 3
        %s239 = scalar_select %p238, %s237, 3
        %s240 = smul.addr %s239, 4
        %s241 = scalar_lea.vmem %s1, %s240
        %s242 = smul.u32 4, %s23
        %s243 = smul.u32 32, %s22
        %p245 = scmp.eq.s32.totalorder %s23, 0
        // Predicated region
        $region37: #{tpu_custom_call.1} parent=35 // pred_check
          %p246 = pneg %p245
        $region38: #{tpu_custom_call.1} parent=35 // pred_check_branch
          %248 = sbr.rel (%p246) target = $region40
        $region39: #{tpu_custom_call.1} parent=35 // pred_region
          %249 = vst [vmem:[#allocation2] sm:$0xff] 0.0
          %250 = vst [vmem:[#allocation2 + $0x8] sm:$0xff] 0.0
          %251 = vst [vmem:[#allocation2 + $0x10] sm:$0xff] 0.0
          %252 = vst [vmem:[#allocation2 + $0x18] sm:$0xff] 0.0
          %253 = vst [vmem:[#allocation2 + $0x20] sm:$0xff] 0.0
          %254 = vst [vmem:[#allocation2 + $0x28] sm:$0xff] 0.0
          %255 = vst [vmem:[#allocation2 + $0x30] sm:$0xff] 0.0
          %256 = vst [vmem:[#allocation2 + $0x38] sm:$0xff] 0.0
          %257 = vst [vmem:[#allocation2 + $0x40] sm:$0xff] 0.0
          %258 = vst [vmem:[#allocation2 + $0x48] sm:$0xff] 0.0
          %259 = vst [vmem:[#allocation2 + $0x50] sm:$0xff] 0.0
          %260 = vst [vmem:[#allocation2 + $0x58] sm:$0xff] 0.0
          %261 = vst [vmem:[#allocation2 + $0x60] sm:$0xff] 0.0
          %262 = vst [vmem:[#allocation2 + $0x68] sm:$0xff] 0.0
          %263 = vst [vmem:[#allocation2 + $0x70] sm:$0xff] 0.0
          %264 = vst [vmem:[#allocation2 + $0x78] sm:$0xff] 0.0
          %265 = vst [vmem:[#allocation2 + $0x80] sm:$0xff] 0.0
          %266 = vst [vmem:[#allocation2 + $0x88] sm:$0xff] 0.0
          %267 = vst [vmem:[#allocation2 + $0x90] sm:$0xff] 0.0
          %268 = vst [vmem:[#allocation2 + $0x98] sm:$0xff] 0.0
          %269 = vst [vmem:[#allocation2 + $0xa0] sm:$0xff] 0.0
          %270 = vst [vmem:[#allocation2 + $0xa8] sm:$0xff] 0.0
          %271 = vst [vmem:[#allocation2 + $0xb0] sm:$0xff] 0.0
          %272 = vst [vmem:[#allocation2 + $0xb8] sm:$0xff] 0.0
          %273 = vst [vmem:[#allocation2 + $0xc0] sm:$0xff] 0.0
          %274 = vst [vmem:[#allocation2 + $0xc8] sm:$0xff] 0.0
          %275 = vst [vmem:[#allocation2 + $0xd0] sm:$0xff] 0.0
          %276 = vst [vmem:[#allocation2 + $0xd8] sm:$0xff] 0.0
          %277 = vst [vmem:[#allocation2 + $0xe0] sm:$0xff] 0.0
          %278 = vst [vmem:[#allocation2 + $0xe8] sm:$0xff] 0.0
          %279 = vst [vmem:[#allocation2 + $0xf0] sm:$0xff] 0.0
          %280 = vst [vmem:[#allocation2 + $0xf8] sm:$0xff] 0.0
        $region40: #{tpu_custom_call.1} parent=35 // pred_fallthru
          _
        %v281 = vld [vmem:[#allocation2] sm:$0xff]
        %v282 = vld [vmem:[#allocation2 + $0x8] sm:$0xff]
        %v283 = vld [vmem:[#allocation2 + $0x10] sm:$0xff]
        %v284 = vld [vmem:[#allocation2 + $0x18] sm:$0xff]
        %v285 = vld [vmem:[#allocation2 + $0x20] sm:$0xff]
        %v286 = vld [vmem:[#allocation2 + $0x28] sm:$0xff]
        %v287 = vld [vmem:[#allocation2 + $0x30] sm:$0xff]
        %v288 = vld [vmem:[#allocation2 + $0x38] sm:$0xff]
        %v289 = vld [vmem:[#allocation2 + $0x40] sm:$0xff]
        %v290 = vld [vmem:[#allocation2 + $0x48] sm:$0xff]
        %v291 = vld [vmem:[#allocation2 + $0x50] sm:$0xff]
        %v292 = vld [vmem:[#allocation2 + $0x58] sm:$0xff]
        %v293 = vld [vmem:[#allocation2 + $0x60] sm:$0xff]
        %v294 = vld [vmem:[#allocation2 + $0x68] sm:$0xff]
        %v295 = vld [vmem:[#allocation2 + $0x70] sm:$0xff]
        %v296 = vld [vmem:[#allocation2 + $0x78] sm:$0xff]
        %v297 = vld [vmem:[#allocation2 + $0x80] sm:$0xff]
        %v298 = vld [vmem:[#allocation2 + $0x88] sm:$0xff]
        %v299 = vld [vmem:[#allocation2 + $0x90] sm:$0xff]
        %v300 = vld [vmem:[#allocation2 + $0x98] sm:$0xff]
        %v301 = vld [vmem:[#allocation2 + $0xa0] sm:$0xff]
        %v302 = vld [vmem:[#allocation2 + $0xa8] sm:$0xff]
        %v303 = vld [vmem:[#allocation2 + $0xb0] sm:$0xff]
        %v304 = vld [vmem:[#allocation2 + $0xb8] sm:$0xff]
        %v305 = vld [vmem:[#allocation2 + $0xc0] sm:$0xff]
        %v306 = vld [vmem:[#allocation2 + $0xc8] sm:$0xff]
        %v307 = vld [vmem:[#allocation2 + $0xd0] sm:$0xff]
        %v308 = vld [vmem:[#allocation2 + $0xd8] sm:$0xff]
        %v309 = vld [vmem:[#allocation2 + $0xe0] sm:$0xff]
        %v310 = vld [vmem:[#allocation2 + $0xe8] sm:$0xff]
        %v311 = vld [vmem:[#allocation2 + $0xf0] sm:$0xff]
        %v312 = vld [vmem:[#allocation2 + $0xf8] sm:$0xff]
        %v313 = vld [vmem:[%s235] sm:$0xf]
        %v314 = vld [vmem:[%s235 + $0x4] sm:$0xf]
        %v315 = vld [vmem:[%s235 + $0x8] sm:$0xf]
        %v316 = vld [vmem:[%s235 + $0xc] sm:$0xf]
        %v317 = vld [vmem:[%s235 + $0x10] sm:$0xf]
        %v318 = vld [vmem:[%s235 + $0x14] sm:$0xf]
        %v319 = vld [vmem:[%s235 + $0x18] sm:$0xf]
        %v320 = vld [vmem:[%s235 + $0x1c] sm:$0xf]
        %v321 = vld [vmem:[%s235 + $0x20] sm:$0xf]
        %v322 = vld [vmem:[%s235 + $0x24] sm:$0xf]
        %v323 = vld [vmem:[%s235 + $0x28] sm:$0xf]
        %v324 = vld [vmem:[%s235 + $0x2c] sm:$0xf]
        %v325 = vld [vmem:[%s235 + $0x30] sm:$0xf]
        %v326 = vld [vmem:[%s235 + $0x34] sm:$0xf]
        %v327 = vld [vmem:[%s235 + $0x38] sm:$0xf]
        %v328 = vld [vmem:[%s235 + $0x3c] sm:$0xf]
        %v329 = vld [vmem:[%s235 + $0x40] sm:$0xf]
        %v330 = vld [vmem:[%s235 + $0x44] sm:$0xf]
        %v331 = vld [vmem:[%s235 + $0x48] sm:$0xf]
        %v332 = vld [vmem:[%s235 + $0x4c] sm:$0xf]
        %v333 = vld [vmem:[%s235 + $0x50] sm:$0xf]
        %v334 = vld [vmem:[%s235 + $0x54] sm:$0xf]
        %v335 = vld [vmem:[%s235 + $0x58] sm:$0xf]
        %v336 = vld [vmem:[%s235 + $0x5c] sm:$0xf]
        %v337 = vld [vmem:[%s235 + $0x60] sm:$0xf]
        %v338 = vld [vmem:[%s235 + $0x64] sm:$0xf]
        %v339 = vld [vmem:[%s235 + $0x68] sm:$0xf]
        %v340 = vld [vmem:[%s235 + $0x6c] sm:$0xf]
        %v341 = vld [vmem:[%s235 + $0x70] sm:$0xf]
        %v342 = vld [vmem:[%s235 + $0x74] sm:$0xf]
        %v343 = vld [vmem:[%s235 + $0x78] sm:$0xf]
        %v344 = vld [vmem:[%s235 + $0x7c] sm:$0xf]
        %v345 = vld [vmem:[%s241] sm:$0xf]
        %v346 = vld [vmem:[%s241 + $0x4] sm:$0xf]
        %v347 = vld [vmem:[%s241 + $0x8] sm:$0xf]
        %v348 = vld [vmem:[%s241 + $0xc] sm:$0xf]
        %v381 = vunpack.c.l.b16 %v313
        %v382 = vunpack.c.l.b16 %v314
        %v383 = vunpack.c.l.b16 %v315
        %v384 = vunpack.c.l.b16 %v316
        %v385 = vunpack.c.l.b16 %v317
        %v386 = vunpack.c.l.b16 %v318
        %v387 = vunpack.c.l.b16 %v319
        %v388 = vunpack.c.l.b16 %v320
        %v389 = vunpack.c.l.b16 %v321
        %v390 = vunpack.c.l.b16 %v322
        %v391 = vunpack.c.l.b16 %v323
        %v392 = vunpack.c.l.b16 %v324
        %v393 = vunpack.c.l.b16 %v325
        %v394 = vunpack.c.l.b16 %v326
        %v395 = vunpack.c.l.b16 %v327
        %v396 = vunpack.c.l.b16 %v328
        %v397 = vunpack.c.l.b16 %v329
        %v398 = vunpack.c.l.b16 %v330
        %v399 = vunpack.c.l.b16 %v331
        %v400 = vunpack.c.l.b16 %v332
        %v401 = vunpack.c.l.b16 %v333
        %v402 = vunpack.c.l.b16 %v334
        %v403 = vunpack.c.l.b16 %v335
        %v404 = vunpack.c.l.b16 %v336
        %v405 = vunpack.c.l.b16 %v337
        %v406 = vunpack.c.l.b16 %v338
        %v407 = vunpack.c.l.b16 %v339
        %v408 = vunpack.c.l.b16 %v340
        %v409 = vunpack.c.l.b16 %v341
        %v410 = vunpack.c.l.b16 %v342
        %v411 = vunpack.c.l.b16 %v343
        %v412 = vunpack.c.l.b16 %v344
        %v413 = vpack.c.b16 %v382, %v381
        %v414 = vpack.c.b16 %v384, %v383
        %v415 = vpack.c.b16 %v386, %v385
        %v416 = vpack.c.b16 %v388, %v387
        %v417 = vpack.c.b16 %v390, %v389
        %v418 = vpack.c.b16 %v392, %v391
        %v419 = vpack.c.b16 %v394, %v393
        %v420 = vpack.c.b16 %v396, %v395
        %v421 = vpack.c.b16 %v398, %v397
        %v422 = vpack.c.b16 %v400, %v399
        %v423 = vpack.c.b16 %v402, %v401
        %v424 = vpack.c.b16 %v404, %v403
        %v425 = vpack.c.b16 %v406, %v405
        %v426 = vpack.c.b16 %v408, %v407
        %v427 = vpack.c.b16 %v410, %v409
        %v428 = vpack.c.b16 %v412, %v411
        %v433 = vunpack.c.l.b16 %v345
        %v434 = vunpack.c.l.b16 %v346
        %v435 = vunpack.c.l.b16 %v347
        %v436 = vunpack.c.l.b16 %v348
        %v437 = vpack.c.b16 %v434, %v433
        %v438 = vpack.c.b16 %v436, %v435
        %vm441 = vcmask 261120
        %v443 = vsel %vm441, %v413, 0
        %v446 = vsel %vm441, %v414, 0
        %v449 = vsel %vm441, %v415, 0
        %v452 = vsel %vm441, %v416, 0
        %v455 = vsel %vm441, %v417, 0
        %v458 = vsel %vm441, %v418, 0
        %v461 = vsel %vm441, %v419, 0
        %v464 = vsel %vm441, %v420, 0
        %v467 = vsel %vm441, %v421, 0
        %v470 = vsel %vm441, %v422, 0
        %v473 = vsel %vm441, %v423, 0
        %v476 = vsel %vm441, %v424, 0
        %v479 = vsel %vm441, %v425, 0
        %v482 = vsel %vm441, %v426, 0
        %v485 = vsel %vm441, %v427, 0
        %v488 = vsel %vm441, %v428, 0
        %490 = vmatprep.subr.bf16.mxu0 0
        %491 = vmatpush1.bf16.msra.mxu0 %v437
        %492 = vmatprep.subr.bf16.mxu0 0
        %493 = vmatpush1.bf16.msra.mxu0 %v438
        %494 = vmatprep.subr.bf16.mxu0 0
        %495 = vmatpush1.bf16.msra.mxu0 0
        %496 = vmatprep.subr.bf16.mxu0 0
        %497 = vmatpush1.bf16.msra.mxu0 0
        %498 = vmatprep.subr.bf16.mxu0 0
        %499 = vmatpush1.bf16.msra.mxu0 0
        %500 = vmatprep.subr.bf16.mxu0 0
        %501 = vmatpush1.bf16.msra.mxu0 0
        %502 = vmatprep.subr.bf16.mxu0 0
        %503 = vmatpush1.bf16.msra.mxu0 0
        %504 = vmatprep.subr.bf16.mxu0 0
        %505 = vmatpush1.bf16.msra.mxu0 0
        %506 = vmatprep.subr.bf16.mxu0 0
        %507 = vmatpush1.bf16.msra.mxu0 0
        %508 = vmatprep.subr.bf16.mxu0 0
        %509 = vmatpush1.bf16.msra.mxu0 0
        %510 = vmatprep.subr.bf16.mxu0 0
        %511 = vmatpush1.bf16.msra.mxu0 0
        %512 = vmatprep.subr.bf16.mxu0 0
        %513 = vmatpush1.bf16.msra.mxu0 0
        %514 = vmatprep.subr.bf16.mxu0 0
        %515 = vmatpush1.bf16.msra.mxu0 0
        %516 = vmatprep.subr.bf16.mxu0 0
        %517 = vmatpush1.bf16.msra.mxu0 0
        %518 = vmatprep.subr.bf16.mxu0 0
        %519 = vmatpush1.bf16.msra.mxu0 0
        %520 = vmatprep.subr.bf16.mxu0 0
        %521 = vmatpush1.bf16.msra.mxu0 0
        %522 = vmatprep.mubr.bf16.mxu0 0
        %523 = vmatmul.mubr.bf16.gmra.mrb[0].mxu0 %v443
        %v524 = vpop.f32.mrb[0].mxu0
        %v525 = vadd.f32 0.0, %v524
        %v526 = vpop.f32.mrb[0].mxu0
        %v527 = vpop.f32.mrb[0].mxu0
        %v528 = vadd.f32 0.0, %v527
        %v529 = vpop.f32.mrb[0].mxu0
        %530 = vmatprep.mubr.bf16.mxu0 0
        %531 = vmatmul.mubr.bf16.gmra.mrb[0].mxu0 %v446
        %v532 = vpop.f32.mrb[0].mxu0
        %v533 = vadd.f32 0.0, %v532
        %v534 = vpop.f32.mrb[0].mxu0
        %v535 = vpop.f32.mrb[0].mxu0
        %v536 = vadd.f32 0.0, %v535
        %v537 = vpop.f32.mrb[0].mxu0
        %538 = vmatprep.mubr.bf16.mxu0 0
        %539 = vmatmul.mubr.bf16.gmra.mrb[0].mxu0 %v449
        %v540 = vpop.f32.mrb[0].mxu0
        %v541 = vadd.f32 0.0, %v540
        %v542 = vpop.f32.mrb[0].mxu0
        %v543 = vpop.f32.mrb[0].mxu0
        %v544 = vadd.f32 0.0, %v543
        %v545 = vpop.f32.mrb[0].mxu0
        %546 = vmatprep.mubr.bf16.mxu0 0
        %547 = vmatmul.mubr.bf16.gmra.mrb[0].mxu0 %v452
        %v548 = vpop.f32.mrb[0].mxu0
        %v549 = vadd.f32 0.0, %v548
        %v550 = vpop.f32.mrb[0].mxu0
        %v551 = vpop.f32.mrb[0].mxu0
        %v552 = vadd.f32 0.0, %v551
        %v553 = vpop.f32.mrb[0].mxu0
        %554 = vmatprep.mubr.bf16.mxu0 0
        %555 = vmatmul.mubr.bf16.gmra.mrb[0].mxu0 %v455
        %v556 = vpop.f32.mrb[0].mxu0
        %v557 = vadd.f32 0.0, %v556
        %v558 = vpop.f32.mrb[0].mxu0
        %v559 = vpop.f32.mrb[0].mxu0
        %v560 = vadd.f32 0.0, %v559
        %v561 = vpop.f32.mrb[0].mxu0
        %562 = vmatprep.mubr.bf16.mxu0 0
        %563 = vmatmul.mubr.bf16.gmra.mrb[0].mxu0 %v458
        %v564 = vpop.f32.mrb[0].mxu0
        %v565 = vadd.f32 0.0, %v564
        %v566 = vpop.f32.mrb[0].mxu0
        %v567 = vpop.f32.mrb[0].mxu0
        %v568 = vadd.f32 0.0, %v567
        %v569 = vpop.f32.mrb[0].mxu0
        %570 = vmatprep.mubr.bf16.mxu0 0
        %571 = vmatmul.mubr.bf16.gmra.mrb[0].mxu0 %v461
        %v572 = vpop.f32.mrb[0].mxu0
        %v573 = vadd.f32 0.0, %v572
        %v574 = vpop.f32.mrb[0].mxu0
        %v575 = vpop.f32.mrb[0].mxu0
        %v576 = vadd.f32 0.0, %v575
        %v577 = vpop.f32.mrb[0].mxu0
        %578 = vmatprep.mubr.bf16.mxu0 0
        %579 = vmatmul.mubr.bf16.gmra.mrb[0].mxu0 %v464
        %v580 = vpop.f32.mrb[0].mxu0
        %v581 = vadd.f32 0.0, %v580
        %v582 = vpop.f32.mrb[0].mxu0
        %v583 = vpop.f32.mrb[0].mxu0
        %v584 = vadd.f32 0.0, %v583
        %v585 = vpop.f32.mrb[0].mxu0
        %586 = vmatprep.mubr.bf16.mxu0 0
        %587 = vmatmul.mubr.bf16.gmra.mrb[0].mxu0 %v467
        %v588 = vpop.f32.mrb[0].mxu0
        %v589 = vadd.f32 0.0, %v588
        %v590 = vpop.f32.mrb[0].mxu0
        %v591 = vpop.f32.mrb[0].mxu0
        %v592 = vadd.f32 0.0, %v591
        %v593 = vpop.f32.mrb[0].mxu0
        %594 = vmatprep.mubr.bf16.mxu0 0
        %595 = vmatmul.mubr.bf16.gmra.mrb[0].mxu0 %v470
        %v596 = vpop.f32.mrb[0].mxu0
        %v597 = vadd.f32 0.0, %v596
        %v598 = vpop.f32.mrb[0].mxu0
        %v599 = vpop.f32.mrb[0].mxu0
        %v600 = vadd.f32 0.0, %v599
        %v601 = vpop.f32.mrb[0].mxu0
        %602 = vmatprep.mubr.bf16.mxu0 0
        %603 = vmatmul.mubr.bf16.gmra.mrb[0].mxu0 %v473
        %v604 = vpop.f32.mrb[0].mxu0
        %v605 = vadd.f32 0.0, %v604
        %v606 = vpop.f32.mrb[0].mxu0
        %v607 = vpop.f32.mrb[0].mxu0
        %v608 = vadd.f32 0.0, %v607
        %v609 = vpop.f32.mrb[0].mxu0
        %610 = vmatprep.mubr.bf16.mxu0 0
        %611 = vmatmul.mubr.bf16.gmra.mrb[0].mxu0 %v476
        %v612 = vpop.f32.mrb[0].mxu0
        %v613 = vadd.f32 0.0, %v612
        %v614 = vpop.f32.mrb[0].mxu0
        %v615 = vpop.f32.mrb[0].mxu0
        %v616 = vadd.f32 0.0, %v615
        %v617 = vpop.f32.mrb[0].mxu0
        %618 = vmatprep.mubr.bf16.mxu0 0
        %619 = vmatmul.mubr.bf16.gmra.mrb[0].mxu0 %v479
        %v620 = vpop.f32.mrb[0].mxu0
        %v621 = vadd.f32 0.0, %v620
        %v622 = vpop.f32.mrb[0].mxu0
        %v623 = vpop.f32.mrb[0].mxu0
        %v624 = vadd.f32 0.0, %v623
        %v625 = vpop.f32.mrb[0].mxu0
        %626 = vmatprep.mubr.bf16.mxu0 0
        %627 = vmatmul.mubr.bf16.gmra.mrb[0].mxu0 %v482
        %v628 = vpop.f32.mrb[0].mxu0
        %v629 = vadd.f32 0.0, %v628
        %v630 = vpop.f32.mrb[0].mxu0
        %v631 = vpop.f32.mrb[0].mxu0
        %v632 = vadd.f32 0.0, %v631
        %v633 = vpop.f32.mrb[0].mxu0
        %634 = vmatprep.mubr.bf16.mxu0 0
        %635 = vmatmul.mubr.bf16.gmra.mrb[0].mxu0 %v485
        %v636 = vpop.f32.mrb[0].mxu0
        %v637 = vadd.f32 0.0, %v636
        %v638 = vpop.f32.mrb[0].mxu0
        %v639 = vpop.f32.mrb[0].mxu0
        %v640 = vadd.f32 0.0, %v639
        %v641 = vpop.f32.mrb[0].mxu0
        %642 = vmatprep.mubr.bf16.mxu0 0
        %643 = vmatmul.mubr.bf16.gmra.mrb[0].mxu0 %v488
        %v644 = vpop.f32.mrb[0].mxu0
        %v645 = vadd.f32 0.0, %v644
        %v646 = vpop.f32.mrb[0].mxu0
        %v647 = vpop.f32.mrb[0].mxu0
        %v648 = vadd.f32 0.0, %v647
        %v649 = vpop.f32.mrb[0].mxu0
        %650 = vdwg.mxu0
        %v651 = vadd.f32 %v281, %v525
        %v652 = vadd.f32 %v282, %v528
        %v653 = vadd.f32 %v283, %v533
        %v654 = vadd.f32 %v284, %v536
        %v655 = vadd.f32 %v285, %v541
        %v656 = vadd.f32 %v286, %v544
        %v657 = vadd.f32 %v287, %v549
        %v658 = vadd.f32 %v288, %v552
        %v659 = vadd.f32 %v289, %v557
        %v660 = vadd.f32 %v290, %v560
        %v661 = vadd.f32 %v291, %v565
        %v662 = vadd.f32 %v292, %v568
        %v663 = vadd.f32 %v293, %v573
        %v664 = vadd.f32 %v294, %v576
        %v665 = vadd.f32 %v295, %v581
        %v666 = vadd.f32 %v296, %v584
        %v667 = vadd.f32 %v297, %v589
        %v668 = vadd.f32 %v298, %v592
        %v669 = vadd.f32 %v299, %v597
        %v670 = vadd.f32 %v300, %v600
        %v671 = vadd.f32 %v301, %v605
        %v672 = vadd.f32 %v302, %v608
        %v673 = vadd.f32 %v303, %v613
        %v674 = vadd.f32 %v304, %v616
        %v675 = vadd.f32 %v305, %v621
        %v676 = vadd.f32 %v306, %v624
        %v677 = vadd.f32 %v307, %v629
        %v678 = vadd.f32 %v308, %v632
        %v679 = vadd.f32 %v309, %v637
        %v680 = vadd.f32 %v310, %v640
        %v681 = vadd.f32 %v311, %v645
        %v682 = vadd.f32 %v312, %v648
        %683 = vst [vmem:[#allocation2] sm:$0xff] %v651
        %684 = vst [vmem:[#allocation2 + $0x8] sm:$0xff] %v652
        %685 = vst [vmem:[#allocation2 + $0x10] sm:$0xff] %v653
        %686 = vst [vmem:[#allocation2 + $0x18] sm:$0xff] %v654
        %687 = vst [vmem:[#allocation2 + $0x20] sm:$0xff] %v655
        %688 = vst [vmem:[#allocation2 + $0x28] sm:$0xff] %v656
        %689 = vst [vmem:[#allocation2 + $0x30] sm:$0xff] %v657
        %690 = vst [vmem:[#allocation2 + $0x38] sm:$0xff] %v658
        %691 = vst [vmem:[#allocation2 + $0x40] sm:$0xff] %v659
        %692 = vst [vmem:[#allocation2 + $0x48] sm:$0xff] %v660
        %693 = vst [vmem:[#allocation2 + $0x50] sm:$0xff] %v661
        %694 = vst [vmem:[#allocation2 + $0x58] sm:$0xff] %v662
        %695 = vst [vmem:[#allocation2 + $0x60] sm:$0xff] %v663
        %696 = vst [vmem:[#allocation2 + $0x68] sm:$0xff] %v664
        %697 = vst [vmem:[#allocation2 + $0x70] sm:$0xff] %v665
        %698 = vst [vmem:[#allocation2 + $0x78] sm:$0xff] %v666
        %699 = vst [vmem:[#allocation2 + $0x80] sm:$0xff] %v667
        %700 = vst [vmem:[#allocation2 + $0x88] sm:$0xff] %v668
        %701 = vst [vmem:[#allocation2 + $0x90] sm:$0xff] %v669
        %702 = vst [vmem:[#allocation2 + $0x98] sm:$0xff] %v670
        %703 = vst [vmem:[#allocation2 + $0xa0] sm:$0xff] %v671
        %704 = vst [vmem:[#allocation2 + $0xa8] sm:$0xff] %v672
        %705 = vst [vmem:[#allocation2 + $0xb0] sm:$0xff] %v673
        %706 = vst [vmem:[#allocation2 + $0xb8] sm:$0xff] %v674
        %707 = vst [vmem:[#allocation2 + $0xc0] sm:$0xff] %v675
        %708 = vst [vmem:[#allocation2 + $0xc8] sm:$0xff] %v676
        %709 = vst [vmem:[#allocation2 + $0xd0] sm:$0xff] %v677
        %710 = vst [vmem:[#allocation2 + $0xd8] sm:$0xff] %v678
        %711 = vst [vmem:[#allocation2 + $0xe0] sm:$0xff] %v679
        %712 = vst [vmem:[#allocation2 + $0xe8] sm:$0xff] %v680
        %713 = vst [vmem:[#allocation2 + $0xf0] sm:$0xff] %v681
        %714 = vst [vmem:[#allocation2 + $0xf8] sm:$0xff] %v682
        // Predicated region
        $region41: #{tpu_custom_call.1} parent=35 // pred_check
          %p715 = pneg %p245
        $region42: #{tpu_custom_call.1} parent=35 // pred_check_branch
          %717 = sbr.rel (%p715) target = $region44
        $region43: #{tpu_custom_call.1} parent=35 // pred_region
          %v718 = vld [vmem:[#allocation2] sm:$0xff]
          %v719 = vld [vmem:[#allocation2 + $0x8] sm:$0xff]
          %v720 = vld [vmem:[#allocation2 + $0x10] sm:$0xff]
          %v721 = vld [vmem:[#allocation2 + $0x18] sm:$0xff]
          %v722 = vld [vmem:[#allocation2 + $0x20] sm:$0xff]
          %v723 = vld [vmem:[#allocation2 + $0x28] sm:$0xff]
          %v724 = vld [vmem:[#allocation2 + $0x30] sm:$0xff]
          %v725 = vld [vmem:[#allocation2 + $0x38] sm:$0xff]
          %v726 = vld [vmem:[#allocation2 + $0x40] sm:$0xff]
          %v727 = vld [vmem:[#allocation2 + $0x48] sm:$0xff]
          %v728 = vld [vmem:[#allocation2 + $0x50] sm:$0xff]
          %v729 = vld [vmem:[#allocation2 + $0x58] sm:$0xff]
          %v730 = vld [vmem:[#allocation2 + $0x60] sm:$0xff]
          %v731 = vld [vmem:[#allocation2 + $0x68] sm:$0xff]
          %v732 = vld [vmem:[#allocation2 + $0x70] sm:$0xff]
          %v733 = vld [vmem:[#allocation2 + $0x78] sm:$0xff]
          %v734 = vld [vmem:[#allocation2 + $0x80] sm:$0xff]
          %v735 = vld [vmem:[#allocation2 + $0x88] sm:$0xff]
          %v736 = vld [vmem:[#allocation2 + $0x90] sm:$0xff]
          %v737 = vld [vmem:[#allocation2 + $0x98] sm:$0xff]
          %v738 = vld [vmem:[#allocation2 + $0xa0] sm:$0xff]
          %v739 = vld [vmem:[#allocation2 + $0xa8] sm:$0xff]
          %v740 = vld [vmem:[#allocation2 + $0xb0] sm:$0xff]
          %v741 = vld [vmem:[#allocation2 + $0xb8] sm:$0xff]
          %v742 = vld [vmem:[#allocation2 + $0xc0] sm:$0xff]
          %v743 = vld [vmem:[#allocation2 + $0xc8] sm:$0xff]
          %v744 = vld [vmem:[#allocation2 + $0xd0] sm:$0xff]
          %v745 = vld [vmem:[#allocation2 + $0xd8] sm:$0xff]
          %v746 = vld [vmem:[#allocation2 + $0xe0] sm:$0xff]
          %v747 = vld [vmem:[#allocation2 + $0xe8] sm:$0xff]
          %v748 = vld [vmem:[#allocation2 + $0xf0] sm:$0xff]
          %v749 = vld [vmem:[#allocation2 + $0xf8] sm:$0xff]
          %v750 = vld [vmem:[%s2] sm:$0x1]
          %v752 = vlaneseq
          %v753 = vshrl.u32 %v752, 7
          %v754 = vsub.s32 0, %v753
          %v755 = vrot.slane %v750, %v754
          %v757 = vmul.f32 %v718, %v755
          %v758 = vmul.f32 %v719, %v755
          %v759 = vmul.f32 %v720, %v755
          %v760 = vmul.f32 %v721, %v755
          %v761 = vmul.f32 %v722, %v755
          %v762 = vmul.f32 %v723, %v755
          %v763 = vmul.f32 %v724, %v755
          %v764 = vmul.f32 %v725, %v755
          %v765 = vmul.f32 %v726, %v755
          %v766 = vmul.f32 %v727, %v755
          %v767 = vmul.f32 %v728, %v755
          %v768 = vmul.f32 %v729, %v755
          %v769 = vmul.f32 %v730, %v755
          %v770 = vmul.f32 %v731, %v755
          %v771 = vmul.f32 %v732, %v755
          %v772 = vmul.f32 %v733, %v755
          %v773 = vmul.f32 %v734, %v755
          %v774 = vmul.f32 %v735, %v755
          %v775 = vmul.f32 %v736, %v755
          %v776 = vmul.f32 %v737, %v755
          %v777 = vmul.f32 %v738, %v755
          %v778 = vmul.f32 %v739, %v755
          %v779 = vmul.f32 %v740, %v755
          %v780 = vmul.f32 %v741, %v755
          %v781 = vmul.f32 %v742, %v755
          %v782 = vmul.f32 %v743, %v755
          %v783 = vmul.f32 %v744, %v755
          %v784 = vmul.f32 %v745, %v755
          %v785 = vmul.f32 %v746, %v755
          %v786 = vmul.f32 %v747, %v755
          %v787 = vmul.f32 %v748, %v755
          %v788 = vmul.f32 %v749, %v755
          %v789 = vld [vmem:[%s3] sm:$0x1]
          %v791 = vlaneseq
          %v792 = vshrl.u32 %v791, 7
          %v793 = vsub.s32 0, %v792
          %v794 = vrot.slane %v789, %v793
          %v796 = vadd.f32 %v757, %v794
          %v797 = vadd.f32 %v758, %v794
          %v798 = vadd.f32 %v759, %v794
          %v799 = vadd.f32 %v760, %v794
          %v800 = vadd.f32 %v761, %v794
          %v801 = vadd.f32 %v762, %v794
          %v802 = vadd.f32 %v763, %v794
          %v803 = vadd.f32 %v764, %v794
          %v804 = vadd.f32 %v765, %v794
          %v805 = vadd.f32 %v766, %v794
          %v806 = vadd.f32 %v767, %v794
          %v807 = vadd.f32 %v768, %v794
          %v808 = vadd.f32 %v769, %v794
          %v809 = vadd.f32 %v770, %v794
          %v810 = vadd.f32 %v771, %v794
          %v811 = vadd.f32 %v772, %v794
          %v812 = vadd.f32 %v773, %v794
          %v813 = vadd.f32 %v774, %v794
          %v814 = vadd.f32 %v775, %v794
          %v815 = vadd.f32 %v776, %v794
          %v816 = vadd.f32 %v777, %v794
          %v817 = vadd.f32 %v778, %v794
          %v818 = vadd.f32 %v779, %v794
          %v819 = vadd.f32 %v780, %v794
          %v820 = vadd.f32 %v781, %v794
          %v821 = vadd.f32 %v782, %v794
          %v822 = vadd.f32 %v783, %v794
          %v823 = vadd.f32 %v784, %v794
          %v824 = vadd.f32 %v785, %v794
          %v825 = vadd.f32 %v786, %v794
          %v826 = vadd.f32 %v787, %v794
          %v827 = vadd.f32 %v788, %v794
          %v828 = vmax.f32 %v796, -60.0
          %v829 = vmax.f32 %v797, -60.0
          %v830 = vmax.f32 %v798, -60.0
          %v831 = vmax.f32 %v799, -60.0
          %v832 = vmax.f32 %v800, -60.0
          %v833 = vmax.f32 %v801, -60.0
          %v834 = vmax.f32 %v802, -60.0
          %v835 = vmax.f32 %v803, -60.0
          %v836 = vmax.f32 %v804, -60.0
          %v837 = vmax.f32 %v805, -60.0
          %v838 = vmax.f32 %v806, -60.0
          %v839 = vmax.f32 %v807, -60.0
          %v840 = vmax.f32 %v808, -60.0
          %v841 = vmax.f32 %v809, -60.0
          %v842 = vmax.f32 %v810, -60.0
          %v843 = vmax.f32 %v811, -60.0
          %v844 = vmax.f32 %v812, -60.0
          %v845 = vmax.f32 %v813, -60.0
          %v846 = vmax.f32 %v814, -60.0
          %v847 = vmax.f32 %v815, -60.0
          %v848 = vmax.f32 %v816, -60.0
          %v849 = vmax.f32 %v817, -60.0
          %v850 = vmax.f32 %v818, -60.0
          %v851 = vmax.f32 %v819, -60.0
          %v852 = vmax.f32 %v820, -60.0
          %v853 = vmax.f32 %v821, -60.0
          %v854 = vmax.f32 %v822, -60.0
          %v855 = vmax.f32 %v823, -60.0
          %v856 = vmax.f32 %v824, -60.0
          %v857 = vmax.f32 %v825, -60.0
          %v858 = vmax.f32 %v826, -60.0
          %v859 = vmax.f32 %v827, -60.0
          %v860 = vmin.f32 %v828, 60.0
          %v861 = vmin.f32 %v829, 60.0
          %v862 = vmin.f32 %v830, 60.0
          %v863 = vmin.f32 %v831, 60.0
          %v864 = vmin.f32 %v832, 60.0
          %v865 = vmin.f32 %v833, 60.0
          %v866 = vmin.f32 %v834, 60.0
          %v867 = vmin.f32 %v835, 60.0
          %v868 = vmin.f32 %v836, 60.0
          %v869 = vmin.f32 %v837, 60.0
          %v870 = vmin.f32 %v838, 60.0
          %v871 = vmin.f32 %v839, 60.0
          %v872 = vmin.f32 %v840, 60.0
          %v873 = vmin.f32 %v841, 60.0
          %v874 = vmin.f32 %v842, 60.0
          %v875 = vmin.f32 %v843, 60.0
          %v876 = vmin.f32 %v844, 60.0
          %v877 = vmin.f32 %v845, 60.0
          %v878 = vmin.f32 %v846, 60.0
          %v879 = vmin.f32 %v847, 60.0
          %v880 = vmin.f32 %v848, 60.0
          %v881 = vmin.f32 %v849, 60.0
          %v882 = vmin.f32 %v850, 60.0
          %v883 = vmin.f32 %v851, 60.0
          %v884 = vmin.f32 %v852, 60.0
          %v885 = vmin.f32 %v853, 60.0
          %v886 = vmin.f32 %v854, 60.0
          %v887 = vmin.f32 %v855, 60.0
          %v888 = vmin.f32 %v856, 60.0
          %v889 = vmin.f32 %v857, 60.0
          %v890 = vmin.f32 %v858, 60.0
          %v891 = vmin.f32 %v859, 60.0
          %v892 = vsub.f32 0.0, %v860
          %v893 = vsub.f32 0.0, %v861
          %v894 = vsub.f32 0.0, %v862
          %v895 = vsub.f32 0.0, %v863
          %v896 = vsub.f32 0.0, %v864
          %v897 = vsub.f32 0.0, %v865
          %v898 = vsub.f32 0.0, %v866
          %v899 = vsub.f32 0.0, %v867
          %v900 = vsub.f32 0.0, %v868
          %v901 = vsub.f32 0.0, %v869
          %v902 = vsub.f32 0.0, %v870
          %v903 = vsub.f32 0.0, %v871
          %v904 = vsub.f32 0.0, %v872
          %v905 = vsub.f32 0.0, %v873
          %v906 = vsub.f32 0.0, %v874
          %v907 = vsub.f32 0.0, %v875
          %v908 = vsub.f32 0.0, %v876
          %v909 = vsub.f32 0.0, %v877
          %v910 = vsub.f32 0.0, %v878
          %v911 = vsub.f32 0.0, %v879
          %v912 = vsub.f32 0.0, %v880
          %v913 = vsub.f32 0.0, %v881
          %v914 = vsub.f32 0.0, %v882
          %v915 = vsub.f32 0.0, %v883
          %v916 = vsub.f32 0.0, %v884
          %v917 = vsub.f32 0.0, %v885
          %v918 = vsub.f32 0.0, %v886
          %v919 = vsub.f32 0.0, %v887
          %v920 = vsub.f32 0.0, %v888
          %v921 = vsub.f32 0.0, %v889
          %v922 = vsub.f32 0.0, %v890
          %v923 = vsub.f32 0.0, %v891
          %v924 = vmul.f32 %v892, 1.442695
          %v925 = vpow.pop %v924
          %v926 = vmul.f32 %v893, 1.442695
          %v927 = vpow.pop %v926
          %v928 = vmul.f32 %v894, 1.442695
          %v929 = vpow.pop %v928
          %v930 = vmul.f32 %v895, 1.442695
          %v931 = vpow.pop %v930
          %v932 = vmul.f32 %v896, 1.442695
          %v933 = vpow.pop %v932
          %v934 = vmul.f32 %v897, 1.442695
          %v935 = vpow.pop %v934
          %v936 = vmul.f32 %v898, 1.442695
          %v937 = vpow.pop %v936
          %v938 = vmul.f32 %v899, 1.442695
          %v939 = vpow.pop %v938
          %v940 = vmul.f32 %v900, 1.442695
          %v941 = vpow.pop %v940
          %v942 = vmul.f32 %v901, 1.442695
          %v943 = vpow.pop %v942
          %v944 = vmul.f32 %v902, 1.442695
          %v945 = vpow.pop %v944
          %v946 = vmul.f32 %v903, 1.442695
          %v947 = vpow.pop %v946
          %v948 = vmul.f32 %v904, 1.442695
          %v949 = vpow.pop %v948
          %v950 = vmul.f32 %v905, 1.442695
          %v951 = vpow.pop %v950
          %v952 = vmul.f32 %v906, 1.442695
          %v953 = vpow.pop %v952
          %v954 = vmul.f32 %v907, 1.442695
          %v955 = vpow.pop %v954
          %v956 = vmul.f32 %v908, 1.442695
          %v957 = vpow.pop %v956
          %v958 = vmul.f32 %v909, 1.442695
          %v959 = vpow.pop %v958
          %v960 = vmul.f32 %v910, 1.442695
          %v961 = vpow.pop %v960
          %v962 = vmul.f32 %v911, 1.442695
          %v963 = vpow.pop %v962
          %v964 = vmul.f32 %v912, 1.442695
          %v965 = vpow.pop %v964
          %v966 = vmul.f32 %v913, 1.442695
          %v967 = vpow.pop %v966
          %v968 = vmul.f32 %v914, 1.442695
          %v969 = vpow.pop %v968
          %v970 = vmul.f32 %v915, 1.442695
          %v971 = vpow.pop %v970
          %v972 = vmul.f32 %v916, 1.442695
          %v973 = vpow.pop %v972
          %v974 = vmul.f32 %v917, 1.442695
          %v975 = vpow.pop %v974
          %v976 = vmul.f32 %v918, 1.442695
          %v977 = vpow.pop %v976
          %v978 = vmul.f32 %v919, 1.442695
          %v979 = vpow.pop %v978
          %v980 = vmul.f32 %v920, 1.442695
          %v981 = vpow.pop %v980
          %v982 = vmul.f32 %v921, 1.442695
          %v983 = vpow.pop %v982
          %v984 = vmul.f32 %v922, 1.442695
          %v985 = vpow.pop %v984
          %v986 = vmul.f32 %v923, 1.442695
          %v987 = vpow.pop %v986
          %v988 = vadd.f32 %v925, 1.0
          %v989 = vadd.f32 %v927, 1.0
          %v990 = vadd.f32 %v929, 1.0
          %v991 = vadd.f32 %v931, 1.0
          %v992 = vadd.f32 %v933, 1.0
          %v993 = vadd.f32 %v935, 1.0
          %v994 = vadd.f32 %v937, 1.0
          %v995 = vadd.f32 %v939, 1.0
          %v996 = vadd.f32 %v941, 1.0
          %v997 = vadd.f32 %v943, 1.0
          %v998 = vadd.f32 %v945, 1.0
          %v999 = vadd.f32 %v947, 1.0
          %v1000 = vadd.f32 %v949, 1.0
          %v1001 = vadd.f32 %v951, 1.0
          %v1002 = vadd.f32 %v953, 1.0
          %v1003 = vadd.f32 %v955, 1.0
          %v1004 = vadd.f32 %v957, 1.0
          %v1005 = vadd.f32 %v959, 1.0
          %v1006 = vadd.f32 %v961, 1.0
          %v1007 = vadd.f32 %v963, 1.0
          %v1008 = vadd.f32 %v965, 1.0
          %v1009 = vadd.f32 %v967, 1.0
          %v1010 = vadd.f32 %v969, 1.0
          %v1011 = vadd.f32 %v971, 1.0
          %v1012 = vadd.f32 %v973, 1.0
          %v1013 = vadd.f32 %v975, 1.0
          %v1014 = vadd.f32 %v977, 1.0
          %v1015 = vadd.f32 %v979, 1.0
          %v1016 = vadd.f32 %v981, 1.0
          %v1017 = vadd.f32 %v983, 1.0
          %v1018 = vadd.f32 %v985, 1.0
          %v1019 = vadd.f32 %v987, 1.0
          %v1020 = vrcp.pop %v988
          %v1021 = vrcp.pop %v989
          %v1022 = vrcp.pop %v990
          %v1023 = vrcp.pop %v991
          %v1024 = vrcp.pop %v992
          %v1025 = vrcp.pop %v993
          %v1026 = vrcp.pop %v994
          %v1027 = vrcp.pop %v995
          %v1028 = vrcp.pop %v996
          %v1029 = vrcp.pop %v997
          %v1030 = vrcp.pop %v998
          %v1031 = vrcp.pop %v999
          %v1032 = vrcp.pop %v1000
          %v1033 = vrcp.pop %v1001
          %v1034 = vrcp.pop %v1002
          %v1035 = vrcp.pop %v1003
          %v1036 = vrcp.pop %v1004
          %v1037 = vrcp.pop %v1005
          %v1038 = vrcp.pop %v1006
          %v1039 = vrcp.pop %v1007
          %v1040 = vrcp.pop %v1008
          %v1041 = vrcp.pop %v1009
          %v1042 = vrcp.pop %v1010
          %v1043 = vrcp.pop %v1011
          %v1044 = vrcp.pop %v1012
          %v1045 = vrcp.pop %v1013
          %v1046 = vrcp.pop %v1014
          %v1047 = vrcp.pop %v1015
          %v1048 = vrcp.pop %v1016
          %v1049 = vrcp.pop %v1017
          %v1050 = vrcp.pop %v1018
          %v1051 = vrcp.pop %v1019
          %v1052 = vmul.f32 %v796, %v1020
          %v1053 = vmul.f32 %v797, %v1021
          %v1054 = vmul.f32 %v798, %v1022
          %v1055 = vmul.f32 %v799, %v1023
          %v1056 = vmul.f32 %v800, %v1024
          %v1057 = vmul.f32 %v801, %v1025
          %v1058 = vmul.f32 %v802, %v1026
          %v1059 = vmul.f32 %v803, %v1027
          %v1060 = vmul.f32 %v804, %v1028
          %v1061 = vmul.f32 %v805, %v1029
          %v1062 = vmul.f32 %v806, %v1030
          %v1063 = vmul.f32 %v807, %v1031
          %v1064 = vmul.f32 %v808, %v1032
          %v1065 = vmul.f32 %v809, %v1033
          %v1066 = vmul.f32 %v810, %v1034
          %v1067 = vmul.f32 %v811, %v1035
          %v1068 = vmul.f32 %v812, %v1036
          %v1069 = vmul.f32 %v813, %v1037
          %v1070 = vmul.f32 %v814, %v1038
          %v1071 = vmul.f32 %v815, %v1039
          %v1072 = vmul.f32 %v816, %v1040
          %v1073 = vmul.f32 %v817, %v1041
          %v1074 = vmul.f32 %v818, %v1042
          %v1075 = vmul.f32 %v819, %v1043
          %v1076 = vmul.f32 %v820, %v1044
          %v1077 = vmul.f32 %v821, %v1045
          %v1078 = vmul.f32 %v822, %v1046
          %v1079 = vmul.f32 %v823, %v1047
          %v1080 = vmul.f32 %v824, %v1048
          %v1081 = vmul.f32 %v825, %v1049
          %v1082 = vmul.f32 %v826, %v1050
          %v1083 = vmul.f32 %v827, %v1051
          %v1084 = vpack.c.bf16 %v1053, %v1052
          %v1085 = vpack.c.bf16 %v1055, %v1054
          %v1086 = vpack.c.bf16 %v1057, %v1056
          %v1087 = vpack.c.bf16 %v1059, %v1058
          %v1088 = vpack.c.bf16 %v1061, %v1060
          %v1089 = vpack.c.bf16 %v1063, %v1062
          %v1090 = vpack.c.bf16 %v1065, %v1064
          %v1091 = vpack.c.bf16 %v1067, %v1066
          %v1092 = vpack.c.bf16 %v1069, %v1068
          %v1093 = vpack.c.bf16 %v1071, %v1070
          %v1094 = vpack.c.bf16 %v1073, %v1072
          %v1095 = vpack.c.bf16 %v1075, %v1074
          %v1096 = vpack.c.bf16 %v1077, %v1076
          %v1097 = vpack.c.bf16 %v1079, %v1078
          %v1098 = vpack.c.bf16 %v1081, %v1080
          %v1099 = vpack.c.bf16 %v1083, %v1082
          %v1116 = vunpack.c.l.b16 %v1084
          %v1117 = vunpack.c.h.b16 %v1084
          %v1118 = vunpack.c.l.b16 %v1085
          %v1119 = vunpack.c.h.b16 %v1085
          %v1120 = vunpack.c.l.b16 %v1086
          %v1121 = vunpack.c.h.b16 %v1086
          %v1122 = vunpack.c.l.b16 %v1087
          %v1123 = vunpack.c.h.b16 %v1087
          %v1124 = vunpack.c.l.b16 %v1088
          %v1125 = vunpack.c.h.b16 %v1088
          %v1126 = vunpack.c.l.b16 %v1089
          %v1127 = vunpack.c.h.b16 %v1089
          %v1128 = vunpack.c.l.b16 %v1090
          %v1129 = vunpack.c.h.b16 %v1090
          %v1130 = vunpack.c.l.b16 %v1091
          %v1131 = vunpack.c.h.b16 %v1091
          %v1132 = vunpack.c.l.b16 %v1092
          %v1133 = vunpack.c.h.b16 %v1092
          %v1134 = vunpack.c.l.b16 %v1093
          %v1135 = vunpack.c.h.b16 %v1093
          %v1136 = vunpack.c.l.b16 %v1094
          %v1137 = vunpack.c.h.b16 %v1094
          %v1138 = vunpack.c.l.b16 %v1095
          %v1139 = vunpack.c.h.b16 %v1095
          %v1140 = vunpack.c.l.b16 %v1096
          %v1141 = vunpack.c.h.b16 %v1096
          %v1142 = vunpack.c.l.b16 %v1097
          %v1143 = vunpack.c.h.b16 %v1097
          %v1144 = vunpack.c.l.b16 %v1098
          %v1145 = vunpack.c.h.b16 %v1098
          %v1146 = vunpack.c.l.b16 %v1099
          %v1147 = vunpack.c.h.b16 %v1099
          %v1148 = vpack.c.b16 %v1116, %v1116
          %v1149 = vpack.c.b16 %v1117, %v1117
          %v1150 = vpack.c.b16 %v1118, %v1118
          %v1151 = vpack.c.b16 %v1119, %v1119
          %v1152 = vpack.c.b16 %v1120, %v1120
          %v1153 = vpack.c.b16 %v1121, %v1121
          %v1154 = vpack.c.b16 %v1122, %v1122
          %v1155 = vpack.c.b16 %v1123, %v1123
          %v1156 = vpack.c.b16 %v1124, %v1124
          %v1157 = vpack.c.b16 %v1125, %v1125
          %v1158 = vpack.c.b16 %v1126, %v1126
          %v1159 = vpack.c.b16 %v1127, %v1127
          %v1160 = vpack.c.b16 %v1128, %v1128
          %v1161 = vpack.c.b16 %v1129, %v1129
          %v1162 = vpack.c.b16 %v1130, %v1130
          %v1163 = vpack.c.b16 %v1131, %v1131
          %v1164 = vpack.c.b16 %v1132, %v1132
          %v1165 = vpack.c.b16 %v1133, %v1133
          %v1166 = vpack.c.b16 %v1134, %v1134
          %v1167 = vpack.c.b16 %v1135, %v1135
          %v1168 = vpack.c.b16 %v1136, %v1136
          %v1169 = vpack.c.b16 %v1137, %v1137
          %v1170 = vpack.c.b16 %v1138, %v1138
          %v1171 = vpack.c.b16 %v1139, %v1139
          %v1172 = vpack.c.b16 %v1140, %v1140
          %v1173 = vpack.c.b16 %v1141, %v1141
          %v1174 = vpack.c.b16 %v1142, %v1142
          %v1175 = vpack.c.b16 %v1143, %v1143
          %v1176 = vpack.c.b16 %v1144, %v1144
          %v1177 = vpack.c.b16 %v1145, %v1145
          %v1178 = vpack.c.b16 %v1146, %v1146
          %v1179 = vpack.c.b16 %v1147, %v1147
          %1212 = vst [vmem:[%s227] sm:$0xf] %v1148
          %1213 = vst [vmem:[%s227 + $0x4] sm:$0xf] %v1149
          %1214 = vst [vmem:[%s227 + $0x8] sm:$0xf] %v1150
          %1215 = vst [vmem:[%s227 + $0xc] sm:$0xf] %v1151
          %1216 = vst [vmem:[%s227 + $0x10] sm:$0xf] %v1152
          %1217 = vst [vmem:[%s227 + $0x14] sm:$0xf] %v1153
          %1218 = vst [vmem:[%s227 + $0x18] sm:$0xf] %v1154
          %1219 = vst [vmem:[%s227 + $0x1c] sm:$0xf] %v1155
          %1220 = vst [vmem:[%s227 + $0x20] sm:$0xf] %v1156
          %1221 = vst [vmem:[%s227 + $0x24] sm:$0xf] %v1157
          %1222 = vst [vmem:[%s227 + $0x28] sm:$0xf] %v1158
          %1223 = vst [vmem:[%s227 + $0x2c] sm:$0xf] %v1159
          %1224 = vst [vmem:[%s227 + $0x30] sm:$0xf] %v1160
          %1225 = vst [vmem:[%s227 + $0x34] sm:$0xf] %v1161
          %1226 = vst [vmem:[%s227 + $0x38] sm:$0xf] %v1162
          %1227 = vst [vmem:[%s227 + $0x3c] sm:$0xf] %v1163
          %1228 = vst [vmem:[%s227 + $0x40] sm:$0xf] %v1164
          %1229 = vst [vmem:[%s227 + $0x44] sm:$0xf] %v1165
          %1230 = vst [vmem:[%s227 + $0x48] sm:$0xf] %v1166
          %1231 = vst [vmem:[%s227 + $0x4c] sm:$0xf] %v1167
          %1232 = vst [vmem:[%s227 + $0x50] sm:$0xf] %v1168
          %1233 = vst [vmem:[%s227 + $0x54] sm:$0xf] %v1169
          %1234 = vst [vmem:[%s227 + $0x58] sm:$0xf] %v1170
          %1235 = vst [vmem:[%s227 + $0x5c] sm:$0xf] %v1171
          %1236 = vst [vmem:[%s227 + $0x60] sm:$0xf] %v1172
          %1237 = vst [vmem:[%s227 + $0x64] sm:$0xf] %v1173
          %1238 = vst [vmem:[%s227 + $0x68] sm:$0xf] %v1174
          %1239 = vst [vmem:[%s227 + $0x6c] sm:$0xf] %v1175
          %1240 = vst [vmem:[%s227 + $0x70] sm:$0xf] %v1176
          %1241 = vst [vmem:[%s227 + $0x74] sm:$0xf] %v1177
          %1242 = vst [vmem:[%s227 + $0x78] sm:$0xf] %v1178
          %1243 = vst [vmem:[%s227 + $0x7c] sm:$0xf] %v1179
        $region44: #{tpu_custom_call.1} parent=35 // pred_fallthru
          _
        %s1244 = sand.u32 %s134, 1
        %s1245 = scalar_lea.sflag [#allocation4], %s1244
        %s1246 = sand.u32 %s134, 1
        %s1247 = smul.addr %s1246, 128
        %s1248 = scalar_lea.vmem [#allocation3], %s1247
        // Predicated region
        $region45: #{tpu_custom_call.1} parent=35 // pred_check
          %p1249 = pneg %p144
        $region46: #{tpu_custom_call.1} parent=35 // pred_check_branch
          %1251 = sbr.rel (%p1249) target = $region48
        $region47: #{tpu_custom_call.1} parent=35 // pred_region
          %s1252 = smul.u32 32, %s22
          %s1254 = ssub.s32 2048, 2048
          %1255 = vsyncadd %s1245, %s1254
          %s1256 = smul.addr %s1252, 64
          %s1257 = scalar_lea.hbm %s4, %s1256
          %s1258 = sshll.u32 %s1248, 4
          %s1259 = int_to_ptr.vmem [resolvable:$true] %s1258
          %1264 = dma.vmem_to_hbm [thread:$0]  %s1259, 2048, %s1257, %s1245, 64, 64, 4
        $region48: #{tpu_custom_call.1} parent=35 // pred_fallthru
          _
      $region36: #{tpu_custom_call.1} parent=5 // pred_fallthru
        _
      %p1265 = scmp.le.s32.totalorder 2, %s13
      // Predicated region
      $region49: #{tpu_custom_call.1} parent=5 // pred_check
        %p1266 = pneg %p1265
      $region50: #{tpu_custom_call.1} parent=5 // pred_check_branch
        %1268 = sbr.rel (%p1266) target = $region52
      $region51: #{tpu_custom_call.1} parent=5 // pred_region
        %s1269 = ssub.s32 %s13, 2
        // Predicated region
        $region53: #{tpu_custom_call.1} parent=51 // pred_check
          %p1270 = pneg %p150
        $region54: #{tpu_custom_call.1} parent=51 // pred_check_branch
          %1272 = sbr.rel (%p1270) target = $region56
        $region55: #{tpu_custom_call.1} parent=51 // pred_region
          %s1273 = sand.u32 %s135, 1
          %s1274 = scalar_lea.sflag [#allocation4], %s1273
          %s1275 = sand.u32 %s135, 1
          %s1276 = smul.addr %s1275, 128
          %s1277 = scalar_lea.vmem [#allocation3], %s1276
          %1278 = dma.done %s1274, 2048
        $region56: #{tpu_custom_call.1} parent=51 // pred_fallthru
          _
      $region52: #{tpu_custom_call.1} parent=5 // pred_fallthru
        _
    $region6: #{tpu_custom_call.1} parent=1 // loop_footer
      %s17 = sadd.s32 1, %s13
    $region7: #{tpu_custom_call.1} parent=1 // loop_footer_branch
      %12 = sbr.rel target = $region3
    $region8: #{tpu_custom_call.1} parent=1 // loop_exit
      _
    %1279 = vsyncpa [#allocation4], 1
    %s1280 = scalar_lea.sflag [#allocation4], 1
    %1281 = vsyncpa %s1280, 1

</llo_original>
